<compile_context>
chip_gen: v7x
topology: tpu7x:2x2x1
jax: 0.10.0
libtpu: 0.0.40
codegen_flags: <defaults>
</compile_context>

<pallas_src>
import jax
import jax.numpy as jnp
from jax.experimental import pallas as pl
from jax.experimental.pallas import tpu as pltpu

L = 3          # num_cross_layers
LN_EPS = 1e-5  # nn.LayerNorm default eps
BN_EPS = 1e-5  # nn.BatchNorm1d default eps


def _cross_kernel(bn_scale_ref, bn_shift_ref, sfcb_ref,          # SMEM (scalar prefetch)
                  x_ref, w_ref, b_ref, ln_g_ref, ln_b_ref,
                  segmean_ref, upper_ref, sfcwt_ref,
                  out_ref):
    """One (row-tile, head) grid step.

    Lane-packed layout: each vreg row carries P logical rows of D features
    (P*D lanes).  Cross weights are block-diagonal with [w | w] blocks, so H
    arrives duplicated into both halves of every D-wide segment; LayerNorm
    statistics over the duplicated segment equal those over D/2, and
    concat([H, H*mask]) reduces to one masked select.  All matmuls take bf16
    operands and accumulate in f32 on the MXU.
    """
    h = pl.program_id(1)                       # head index (per-head BN scalars)
    x0 = x_ref[0]                              # (TR, P*D) f32
    x = x0
    segmean = segmean_ref[...]                 # (P*D, P*D) bf16, 1/D per segment
    upper = upper_ref[...] != 0.0              # (1, P*D)  True on the H*mask half

    for l in range(L):                         # static unroll over cross layers
        # Linear(D, D//2, bias=False), duplicated: (TR, P*D) with [H, H] segments
        Hd = jnp.dot(x.astype(jnp.bfloat16), w_ref[l],
                     preferred_element_type=jnp.float32)
        # BatchNorm1d(num_heads), eval mode folded to per-head scale/shift (SMEM)
        Hd = Hd * bn_scale_ref[l, h] + bn_shift_ref[l, h]
        # LayerNorm over each segment: segmented mean/var via MXU matmuls
        mu = jnp.dot(Hd.astype(jnp.bfloat16), segmean,
                     preferred_element_type=jnp.float32)
        d = Hd - mu
        var = jnp.dot((d * d).astype(jnp.bfloat16), segmean,
                      preferred_element_type=jnp.float32)
        norm_H = d * jax.lax.rsqrt(var + LN_EPS) * ln_g_ref[l] + ln_b_ref[l]
        mask = jnp.maximum(norm_H, 0.0)        # ReLU masker
        # concat([H, H*mask], -1) in packed form: keep H on the lower half of
        # each segment, multiply by the mask on the upper (duplicated) half.
        h_cat = Hd * jnp.where(upper, mask, 1.0)
        x = x0 * (h_cat + b_ref[l]) + x
        # TODO(synk): nn.Dropout is stochastic; eval-mode (identity) implemented.

    # sfc = Linear(D, 1), emitted transposed so the output block is lane-dense:
    # (P, PD) contracted with (TR, PD) along PD -> (P, TR)
    logit_t = jax.lax.dot_general(
        sfcwt_ref[...], x.astype(jnp.bfloat16),
        dimension_numbers=(((1,), (1,)), ((), ())),
        preferred_element_type=jnp.float32)
    out_ref[0] = (logit_t + sfcb_ref[0]).astype(out_ref.dtype)


def _pack_params(w, b, ln_g, ln_b, sfc_w, P):
    """Lane-packed parameter matrices for packing factor P (bf16 MXU operands)."""
    L_, D, Dh = w.shape
    PD = P * D
    # block-diagonal cross weights; each logical row's D x D block is [w | w]
    wdup = jnp.concatenate([w, w], axis=-1)                      # (L, D, D)
    wp = jnp.zeros((L_, PD, PD), jnp.float32)
    for j in range(P):
        wp = wp.at[:, j * D:(j + 1) * D, j * D:(j + 1) * D].set(wdup)
    wp = wp.astype(jnp.bfloat16)
    # lane-tiled cross bias (stays f32, VPU side)
    bp = jnp.tile(b, (1, P)).reshape(L_, 1, PD)
    # LayerNorm affine tiled into the duplicated D-wide layout: [g, g] per segment
    ln_gp = jnp.tile(jnp.concatenate([ln_g, ln_g], -1), (1, P)).reshape(L_, 1, PD)
    ln_bp = jnp.tile(jnp.concatenate([ln_b, ln_b], -1), (1, P)).reshape(L_, 1, PD)
    # segmented mean matrix: 1/D inside each D-wide segment (exact in bf16 for pow2 D)
    idx = jnp.arange(PD)
    segmean = (((idx[:, None] // D) == (idx[None, :] // D)).astype(jnp.float32) / D
               ).astype(jnp.bfloat16)
    # 0/1 selector for the upper (H*mask) half of every segment
    upper = ((idx % D) >= Dh).astype(jnp.float32).reshape(1, PD)
    # sfc weight in transposed segment-reduce form: row j holds sfc_w in segment j
    sfcw_t = jnp.zeros((P, PD), jnp.float32)
    for j in range(P):
        sfcw_t = sfcw_t.at[j, j * D:(j + 1) * D].set(sfc_w)
    sfcw_t = sfcw_t.astype(jnp.bfloat16)
    return wp, bp, ln_gp, ln_bp, segmean, upper, sfcw_t


def _default_lanes():
    """256-wide packing on v6e/v7x (2x256x256 MXUs); 128 elsewhere (v5e & older)."""
    try:
        kind = jax.devices()[0].device_kind.lower()
    except Exception:
        return 128
    return 256 if ("v6" in kind or "v7" in kind) else 128


def linear_cross_network(x, params, *, tile_rows=None, lanes=None):
    """x: (B, num_heads, D) f32 -> (B, num_heads, 1) f32 (eval-mode forward).

    tile_rows counts packed rows per grid step (each packs P = lanes//D logical
    rows); it must be a multiple of 128 (lane-dense output) or cover all rows.
    """
    B, nh, D = x.shape
    assert D % 2 == 0
    w, b, ln_g, ln_b, bn_scale, bn_shift, sfc_w, sfc_b = params

    if lanes is None:
        lanes = _default_lanes()
    P = 1
    for width in (lanes, 128):
        if D <= width and width % D == 0:
            P = width // D
            break
    PD = P * D

    # pad the batch up to a whole number of packed rows (and whole row tiles)
    rows_p = -(-B // P)
    if tile_rows is None:
        tile_rows = min(rows_p, 1024)
    if tile_rows < rows_p:
        assert tile_rows % 128 == 0, "row tile must be lane-dense (multiple of 128)"
        rows_p = -(-rows_p // tile_rows) * tile_rows
    else:
        tile_rows = rows_p
    n_row_tiles = rows_p // tile_rows
    B_total = rows_p * P
    if B_total != B:
        x = jnp.concatenate([x, jnp.zeros((B_total - B, nh, D), x.dtype)], axis=0)

    # head-major, lane-packed rows: (nh, rows_p, P*D); free reshape for nh == 1,
    # one XLA transpose otherwise.
    xp = jnp.transpose(x, (1, 0, 2)).reshape(nh, rows_p, PD)

    wp, bp, ln_gp, ln_bp, segmean, upper, sfcw_t = _pack_params(
        w, b, ln_g, ln_b, sfc_w, P)
    sfc_b_vec = jnp.reshape(sfc_b, (1,)).astype(jnp.float32)

    out = pl.pallas_call(
        _cross_kernel,
        out_shape=jax.ShapeDtypeStruct((nh, P, rows_p), jnp.float32),
        grid_spec=pltpu.PrefetchScalarGridSpec(
            num_scalar_prefetch=3,                 # bn_scale, bn_shift, sfc_b -> SMEM
            grid=(n_row_tiles, nh),                # large row axis first (megacore)
            in_specs=[
                pl.BlockSpec((1, tile_rows, PD), lambda i, h, *_: (h, i, 0)),  # x rows
                pl.BlockSpec((L, PD, PD), lambda i, h, *_: (0, 0, 0)),         # [w|w] blocks
                pl.BlockSpec((L, 1, PD), lambda i, h, *_: (0, 0, 0)),          # cross bias
                pl.BlockSpec((L, 1, PD), lambda i, h, *_: (0, 0, 0)),          # LN gamma
                pl.BlockSpec((L, 1, PD), lambda i, h, *_: (0, 0, 0)),          # LN beta
                pl.BlockSpec((PD, PD), lambda i, h, *_: (0, 0)),               # segment mean
                pl.BlockSpec((1, PD), lambda i, h, *_: (0, 0)),                # upper-half sel
                pl.BlockSpec((P, PD), lambda i, h, *_: (0, 0)),                # sfc (transposed)
            ],
            out_specs=pl.BlockSpec((1, P, tile_rows), lambda i, h, *_: (h, 0, i)),
        ),
        compiler_params=pltpu.CompilerParams(
            dimension_semantics=("parallel", "parallel"),
            vmem_limit_bytes=32 * 1024 * 1024),
    )(bn_scale, bn_shift, sfc_b_vec, xp, wp, bp, ln_gp, ln_bp, segmean, upper, sfcw_t)

    # (nh, P, rows_p) -> (B, nh, 1), undoing head-major lane packing + padding
    return jnp.transpose(out, (2, 1, 0)).reshape(B_total, nh)[:B, :, None]


def make_params(key, nh, D):
    """Logical (unpacked) parameters; BN eval-mode stats pre-folded to scale/shift."""
    Dh = D // 2
    ks = jax.random.split(key, 10)
    bound = 1.0 / (D ** 0.5)
    # nn.Linear default init: U(-1/sqrt(in), 1/sqrt(in)); stored as W^T (D, Dh)
    w = jax.random.uniform(ks[0], (L, D, Dh), minval=-bound, maxval=bound, dtype=jnp.float32)
    # nn.init.uniform_(b) -> U(0, 1)
    b = jax.random.uniform(ks[1], (L, D), minval=0.0, maxval=1.0, dtype=jnp.float32)
    # LayerNorm affine (randomized around defaults so validation is meaningful)
    ln_g = 1.0 + 0.1 * jax.random.normal(ks[2], (L, Dh), dtype=jnp.float32)
    ln_b = 0.1 * jax.random.normal(ks[3], (L, Dh), dtype=jnp.float32)
    # BatchNorm1d(num_heads) eval mode: fold (gamma, beta, running stats) per head
    bn_gamma = jax.random.uniform(ks[4], (L, nh), minval=0.5, maxval=1.5, dtype=jnp.float32)
    bn_beta = 0.1 * jax.random.normal(ks[5], (L, nh), dtype=jnp.float32)
    bn_rm = 0.1 * jax.random.normal(ks[6], (L, nh), dtype=jnp.float32)
    bn_rv = jax.random.uniform(ks[7], (L, nh), minval=0.5, maxval=1.5, dtype=jnp.float32)
    bn_scale = bn_gamma * jax.lax.rsqrt(bn_rv + BN_EPS)
    bn_shift = bn_beta - bn_rm * bn_scale
    # sfc = Linear(D, 1)
    sfc_w = jax.random.uniform(ks[8], (D,), minval=-bound, maxval=bound, dtype=jnp.float32)
    sfc_b = jax.random.uniform(ks[9], (), minval=-bound, maxval=bound, dtype=jnp.float32)
    return (w, b, ln_g, ln_b, bn_scale, bn_shift, sfc_w, sfc_b)


def reference(x, params):
    """Pure-JAX full-precision reference of the eval-mode forward."""
    w, b, ln_g, ln_b, bn_scale, bn_shift, sfc_w, sfc_b = params
    hp = jax.lax.Precision.HIGHEST
    x0 = x
    xx = x
    for l in range(L):
        H = jnp.einsum('bhd,de->bhe', xx, w[l], precision=hp)
        H = H * bn_scale[l][None, :, None] + bn_shift[l][None, :, None]
        mu = H.mean(-1, keepdims=True)
        var = ((H - mu) ** 2).mean(-1, keepdims=True)
        norm_H = (H - mu) * jax.lax.rsqrt(var + LN_EPS) * ln_g[l] + ln_b[l]
        mask = jnp.maximum(norm_H, 0.0)
        H_cat = jnp.concatenate([H, H * mask], axis=-1)
        xx = x0 * (H_cat + b[l]) + xx
    return (jnp.einsum('bhd,d->bh', xx, sfc_w, precision=hp) + sfc_b)[..., None]


def _bf16(v):
    return v.astype(jnp.bfloat16).astype(jnp.float32)


def reference_bf16(x, params):
    """Reference mirroring the kernel's bf16 matmul operands / f32 accumulation."""
    w, b, ln_g, ln_b, bn_scale, bn_shift, sfc_w, sfc_b = params
    hp = jax.lax.Precision.HIGHEST
    wb, sfcw_b = _bf16(w), _bf16(sfc_w)
    x0 = x
    xx = x
    for l in range(L):
        H = jnp.einsum('bhd,de->bhe', _bf16(xx), wb[l], precision=hp)
        H = H * bn_scale[l][None, :, None] + bn_shift[l][None, :, None]
        mu = _bf16(H).mean(-1, keepdims=True)
        d = H - mu
        var = _bf16(d * d).mean(-1, keepdims=True)
        norm_H = d * jax.lax.rsqrt(var + LN_EPS) * ln_g[l] + ln_b[l]
        mask = jnp.maximum(norm_H, 0.0)
        H_cat = jnp.concatenate([H, H * mask], axis=-1)
        xx = x0 * (H_cat + b[l]) + xx
    return (jnp.einsum('bhd,d->bh', _bf16(xx), sfcw_b, precision=hp) + sfc_b)[..., None]


if __name__ == "__main__":
    B, nh, D = 2000, 2, 32            # input_dim=32, num_heads=2
    key = jax.random.PRNGKey(0)
    kx, kp = jax.random.split(key)
    x = jax.random.normal(kx, (B, nh, D), dtype=jnp.float32)
    params = make_params(kp, nh, D)

    # tile_rows=128: multi-step row pipeline on both the 128-lane (P=4 -> 4 row
    # tiles) and 256-lane (P=8 -> 2 row tiles) packings, and B=2000 exercises
    # the batch-padding path (not a multiple of P).
    out = linear_cross_network(x, params, tile_rows=128)
    out = jax.block_until_ready(out)
    assert out.shape == (B, nh, 1)

    ref_bf = reference_bf16(x, params)   # same bf16 cast points as the kernel
    ref_f32 = reference(x, params)       # full-precision reference
    err_bf = float(jnp.max(jnp.abs(out - ref_bf)))
    err_f32 = float(jnp.max(jnp.abs(out - ref_f32)))
    rel_l2 = float(jnp.linalg.norm(out - ref_f32) /
                   (jnp.linalg.norm(ref_f32) + 1e-6))
    # tight check vs the bf16-emulated reference (catches layout / math bugs)
    assert jnp.allclose(out, ref_bf, atol=2e-2, rtol=2e-2), (err_bf, err_f32, rel_l2)
    # loose sanity check vs the full-precision reference (bf16-level agreement)
    assert rel_l2 < 0.05, (err_bf, err_f32, rel_l2)
    print("KERNEL_OK")
</pallas_src>

<mosaic_0001>
module attributes {stable_mosaic.version = 11 : i64} {
  func.func @_cross_kernel(%arg0: i32, %arg1: i32, %arg2: memref<3x2xf32, #tpu.memory_space<smem>>, %arg3: memref<3x2xf32, #tpu.memory_space<smem>>, %arg4: memref<1xf32, #tpu.memory_space<smem>>, %arg5: memref<1x128x128xf32, #tpu.memory_space<vmem>>, %arg6: memref<3x128x128xbf16, #tpu.memory_space<vmem>>, %arg7: memref<3x1x128xf32, #tpu.memory_space<vmem>>, %arg8: memref<3x1x128xf32, #tpu.memory_space<vmem>>, %arg9: memref<3x1x128xf32, #tpu.memory_space<vmem>>, %arg10: memref<128x128xbf16, #tpu.memory_space<vmem>>, %arg11: memref<1x128xf32, #tpu.memory_space<vmem>>, %arg12: memref<4x128xbf16, #tpu.memory_space<vmem>>, %arg13: memref<1x4x128xf32, #tpu.memory_space<vmem>>) attributes {dimension_semantics = [#tpu.dimension_semantics<parallel>, #tpu.dimension_semantics<parallel>], iteration_bounds = array<i64: 4, 2>, scalar_prefetch = 3 : i64, scratch_operands = 0 : i64, tpu.core_type = #tpu.core_type<tc>, window_params = [{transform_indices = @transform_0, window_bounds = array<i64: 1, 128, 128>}, {pipeline_mode = #tpu.pipeline_mode<synchronous>, transform_indices = @transform_1, window_bounds = array<i64: 3, 128, 128>}, {pipeline_mode = #tpu.pipeline_mode<synchronous>, transform_indices = @transform_2, window_bounds = array<i64: 3, 1, 128>}, {pipeline_mode = #tpu.pipeline_mode<synchronous>, transform_indices = @transform_3, window_bounds = array<i64: 3, 1, 128>}, {pipeline_mode = #tpu.pipeline_mode<synchronous>, transform_indices = @transform_4, window_bounds = array<i64: 3, 1, 128>}, {pipeline_mode = #tpu.pipeline_mode<synchronous>, transform_indices = @transform_5, window_bounds = array<i64: 128, 128>}, {pipeline_mode = #tpu.pipeline_mode<synchronous>, transform_indices = @transform_6, window_bounds = array<i64: 1, 128>}, {pipeline_mode = #tpu.pipeline_mode<synchronous>, transform_indices = @transform_7, window_bounds = array<i64: 4, 128>}, {transform_indices = @transform_8, window_bounds = array<i64: 1, 4, 128>}]} {
    %c0 = arith.constant 0 : index
    %c0_0 = arith.constant 0 : index
    %c0_1 = arith.constant 0 : index
    %0 = vector.load %arg5[%c0, %c0_0, %c0_1] : memref<1x128x128xf32, #tpu.memory_space<vmem>>, vector<1x128x128xf32>
    %1 = vector.shape_cast %0 : vector<1x128x128xf32> to vector<128x128xf32>
    %c0_2 = arith.constant 0 : index
    %c0_3 = arith.constant 0 : index
    %2 = vector.load %arg10[%c0_2, %c0_3] : memref<128x128xbf16, #tpu.memory_space<vmem>>, vector<128x128xbf16>
    %c0_4 = arith.constant 0 : index
    %c0_5 = arith.constant 0 : index
    %3 = vector.load %arg11[%c0_4, %c0_5] : memref<1x128xf32, #tpu.memory_space<vmem>>, vector<1x128xf32>
    %cst = arith.constant 0.000000e+00 : f32
    %4 = vector.broadcast %cst : f32 to vector<1x128xf32>
    %5 = arith.cmpf one, %3, %4 : vector<1x128xf32>
    %6 = arith.truncf %1 : vector<128x128xf32> to vector<128x128xbf16>
    %c0_6 = arith.constant 0 : index
    %c0_7 = arith.constant 0 : index
    %c0_8 = arith.constant 0 : index
    %7 = vector.load %arg6[%c0_6, %c0_7, %c0_8] : memref<3x128x128xbf16, #tpu.memory_space<vmem>>, vector<1x128x128xbf16>
    %8 = vector.shape_cast %7 : vector<1x128x128xbf16> to vector<128x128xbf16>
    %cst_9 = arith.constant dense<0.000000e+00> : vector<128x128xf32>
    %9 = tpu.matmul %6, %8, %cst_9 {dimension_numbers = #tpu.dot_dimension_numbers<[1], [0], [0], [1], [0, 0, 1, 1], [], []>} : vector<128x128xbf16>, vector<128x128xbf16>, vector<128x128xf32> -> vector<128x128xf32>
    %c0_10 = arith.constant 0 : index
    %10 = arith.index_cast %arg1 : i32 to index
    %11 = memref.load %arg2[%c0_10, %10] : memref<3x2xf32, #tpu.memory_space<smem>>
    %12 = vector.broadcast %11 : f32 to vector<128x128xf32>
    %13 = arith.mulf %9, %12 : vector<128x128xf32>
    %c0_11 = arith.constant 0 : index
    %14 = arith.index_cast %arg1 : i32 to index
    %15 = memref.load %arg3[%c0_11, %14] : memref<3x2xf32, #tpu.memory_space<smem>>
    %16 = vector.broadcast %15 : f32 to vector<128x128xf32>
    %17 = arith.addf %13, %16 : vector<128x128xf32>
    %18 = arith.truncf %17 : vector<128x128xf32> to vector<128x128xbf16>
    %cst_12 = arith.constant dense<0.000000e+00> : vector<128x128xf32>
    %19 = tpu.matmul %18, %2, %cst_12 {dimension_numbers = #tpu.dot_dimension_numbers<[1], [0], [0], [1], [0, 0, 1, 1], [], []>} : vector<128x128xbf16>, vector<128x128xbf16>, vector<128x128xf32> -> vector<128x128xf32>
    %20 = arith.subf %17, %19 : vector<128x128xf32>
    %21 = arith.mulf %20, %20 : vector<128x128xf32>
    %22 = arith.truncf %21 : vector<128x128xf32> to vector<128x128xbf16>
    %cst_13 = arith.constant dense<0.000000e+00> : vector<128x128xf32>
    %23 = tpu.matmul %22, %2, %cst_13 {dimension_numbers = #tpu.dot_dimension_numbers<[1], [0], [0], [1], [0, 0, 1, 1], [], []>} : vector<128x128xbf16>, vector<128x128xbf16>, vector<128x128xf32> -> vector<128x128xf32>
    %cst_14 = arith.constant 9.99999974E-6 : f32
    %24 = vector.broadcast %cst_14 : f32 to vector<128x128xf32>
    %25 = arith.addf %23, %24 : vector<128x128xf32>
    %26 = math.rsqrt %25 : vector<128x128xf32>
    %27 = arith.mulf %20, %26 : vector<128x128xf32>
    %c0_15 = arith.constant 0 : index
    %c0_16 = arith.constant 0 : index
    %c0_17 = arith.constant 0 : index
    %28 = vector.load %arg8[%c0_15, %c0_16, %c0_17] : memref<3x1x128xf32, #tpu.memory_space<vmem>>, vector<1x1x128xf32>
    %29 = vector.shape_cast %28 : vector<1x1x128xf32> to vector<1x128xf32>
    %30 = vector.broadcast %29 : vector<1x128xf32> to vector<128x128xf32>
    %31 = arith.mulf %27, %30 : vector<128x128xf32>
    %c0_18 = arith.constant 0 : index
    %c0_19 = arith.constant 0 : index
    %c0_20 = arith.constant 0 : index
    %32 = vector.load %arg9[%c0_18, %c0_19, %c0_20] : memref<3x1x128xf32, #tpu.memory_space<vmem>>, vector<1x1x128xf32>
    %33 = vector.shape_cast %32 : vector<1x1x128xf32> to vector<1x128xf32>
    %34 = vector.broadcast %33 : vector<1x128xf32> to vector<128x128xf32>
    %35 = arith.addf %31, %34 : vector<128x128xf32>
    %cst_21 = arith.constant 0.000000e+00 : f32
    %36 = vector.broadcast %cst_21 : f32 to vector<128x128xf32>
    %37 = arith.maximumf %35, %36 : vector<128x128xf32>
    %cst_22 = arith.constant 1.000000e+00 : f32
    %38 = vector.shape_cast %5 : vector<1x128xi1> to vector<1x128xi1>
    %39 = vector.broadcast %38 : vector<1x128xi1> to vector<128x128xi1>
    %40 = vector.broadcast %cst_22 : f32 to vector<128x128xf32>
    %41 = arith.select %39, %37, %40 : vector<128x128xi1>, vector<128x128xf32>
    %42 = arith.mulf %17, %41 : vector<128x128xf32>
    %c0_23 = arith.constant 0 : index
    %c0_24 = arith.constant 0 : index
    %c0_25 = arith.constant 0 : index
    %43 = vector.load %arg7[%c0_23, %c0_24, %c0_25] : memref<3x1x128xf32, #tpu.memory_space<vmem>>, vector<1x1x128xf32>
    %44 = vector.shape_cast %43 : vector<1x1x128xf32> to vector<1x128xf32>
    %45 = vector.broadcast %44 : vector<1x128xf32> to vector<128x128xf32>
    %46 = arith.addf %42, %45 : vector<128x128xf32>
    %47 = arith.mulf %1, %46 : vector<128x128xf32>
    %48 = arith.addf %47, %1 : vector<128x128xf32>
    %49 = arith.truncf %48 : vector<128x128xf32> to vector<128x128xbf16>
    %c1 = arith.constant 1 : index
    %c0_26 = arith.constant 0 : index
    %c0_27 = arith.constant 0 : index
    %50 = vector.load %arg6[%c1, %c0_26, %c0_27] : memref<3x128x128xbf16, #tpu.memory_space<vmem>>, vector<1x128x128xbf16>
    %51 = vector.shape_cast %50 : vector<1x128x128xbf16> to vector<128x128xbf16>
    %cst_28 = arith.constant dense<0.000000e+00> : vector<128x128xf32>
    %52 = tpu.matmul %49, %51, %cst_28 {dimension_numbers = #tpu.dot_dimension_numbers<[1], [0], [0], [1], [0, 0, 1, 1], [], []>} : vector<128x128xbf16>, vector<128x128xbf16>, vector<128x128xf32> -> vector<128x128xf32>
    %c1_29 = arith.constant 1 : index
    %53 = arith.index_cast %arg1 : i32 to index
    %54 = memref.load %arg2[%c1_29, %53] : memref<3x2xf32, #tpu.memory_space<smem>>
    %55 = vector.broadcast %54 : f32 to vector<128x128xf32>
    %56 = arith.mulf %52, %55 : vector<128x128xf32>
    %c1_30 = arith.constant 1 : index
    %57 = arith.index_cast %arg1 : i32 to index
    %58 = memref.load %arg3[%c1_30, %57] : memref<3x2xf32, #tpu.memory_space<smem>>
    %59 = vector.broadcast %58 : f32 to vector<128x128xf32>
    %60 = arith.addf %56, %59 : vector<128x128xf32>
    %61 = arith.truncf %60 : vector<128x128xf32> to vector<128x128xbf16>
    %cst_31 = arith.constant dense<0.000000e+00> : vector<128x128xf32>
    %62 = tpu.matmul %61, %2, %cst_31 {dimension_numbers = #tpu.dot_dimension_numbers<[1], [0], [0], [1], [0, 0, 1, 1], [], []>} : vector<128x128xbf16>, vector<128x128xbf16>, vector<128x128xf32> -> vector<128x128xf32>
    %63 = arith.subf %60, %62 : vector<128x128xf32>
    %64 = arith.mulf %63, %63 : vector<128x128xf32>
    %65 = arith.truncf %64 : vector<128x128xf32> to vector<128x128xbf16>
    %cst_32 = arith.constant dense<0.000000e+00> : vector<128x128xf32>
    %66 = tpu.matmul %65, %2, %cst_32 {dimension_numbers = #tpu.dot_dimension_numbers<[1], [0], [0], [1], [0, 0, 1, 1], [], []>} : vector<128x128xbf16>, vector<128x128xbf16>, vector<128x128xf32> -> vector<128x128xf32>
    %cst_33 = arith.constant 9.99999974E-6 : f32
    %67 = vector.broadcast %cst_33 : f32 to vector<128x128xf32>
    %68 = arith.addf %66, %67 : vector<128x128xf32>
    %69 = math.rsqrt %68 : vector<128x128xf32>
    %70 = arith.mulf %63, %69 : vector<128x128xf32>
    %c1_34 = arith.constant 1 : index
    %c0_35 = arith.constant 0 : index
    %c0_36 = arith.constant 0 : index
    %71 = vector.load %arg8[%c1_34, %c0_35, %c0_36] : memref<3x1x128xf32, #tpu.memory_space<vmem>>, vector<1x1x128xf32>
    %72 = vector.shape_cast %71 : vector<1x1x128xf32> to vector<1x128xf32>
    %73 = vector.broadcast %72 : vector<1x128xf32> to vector<128x128xf32>
    %74 = arith.mulf %70, %73 : vector<128x128xf32>
    %c1_37 = arith.constant 1 : index
    %c0_38 = arith.constant 0 : index
    %c0_39 = arith.constant 0 : index
    %75 = vector.load %arg9[%c1_37, %c0_38, %c0_39] : memref<3x1x128xf32, #tpu.memory_space<vmem>>, vector<1x1x128xf32>
    %76 = vector.shape_cast %75 : vector<1x1x128xf32> to vector<1x128xf32>
    %77 = vector.broadcast %76 : vector<1x128xf32> to vector<128x128xf32>
    %78 = arith.addf %74, %77 : vector<128x128xf32>
    %cst_40 = arith.constant 0.000000e+00 : f32
    %79 = vector.broadcast %cst_40 : f32 to vector<128x128xf32>
    %80 = arith.maximumf %78, %79 : vector<128x128xf32>
    %cst_41 = arith.constant 1.000000e+00 : f32
    %81 = vector.shape_cast %5 : vector<1x128xi1> to vector<1x128xi1>
    %82 = vector.broadcast %81 : vector<1x128xi1> to vector<128x128xi1>
    %83 = vector.broadcast %cst_41 : f32 to vector<128x128xf32>
    %84 = arith.select %82, %80, %83 : vector<128x128xi1>, vector<128x128xf32>
    %85 = arith.mulf %60, %84 : vector<128x128xf32>
    %c1_42 = arith.constant 1 : index
    %c0_43 = arith.constant 0 : index
    %c0_44 = arith.constant 0 : index
    %86 = vector.load %arg7[%c1_42, %c0_43, %c0_44] : memref<3x1x128xf32, #tpu.memory_space<vmem>>, vector<1x1x128xf32>
    %87 = vector.shape_cast %86 : vector<1x1x128xf32> to vector<1x128xf32>
    %88 = vector.broadcast %87 : vector<1x128xf32> to vector<128x128xf32>
    %89 = arith.addf %85, %88 : vector<128x128xf32>
    %90 = arith.mulf %1, %89 : vector<128x128xf32>
    %91 = arith.addf %90, %48 : vector<128x128xf32>
    %92 = arith.truncf %91 : vector<128x128xf32> to vector<128x128xbf16>
    %c2 = arith.constant 2 : index
    %c0_45 = arith.constant 0 : index
    %c0_46 = arith.constant 0 : index
    %93 = vector.load %arg6[%c2, %c0_45, %c0_46] : memref<3x128x128xbf16, #tpu.memory_space<vmem>>, vector<1x128x128xbf16>
    %94 = vector.shape_cast %93 : vector<1x128x128xbf16> to vector<128x128xbf16>
    %cst_47 = arith.constant dense<0.000000e+00> : vector<128x128xf32>
    %95 = tpu.matmul %92, %94, %cst_47 {dimension_numbers = #tpu.dot_dimension_numbers<[1], [0], [0], [1], [0, 0, 1, 1], [], []>} : vector<128x128xbf16>, vector<128x128xbf16>, vector<128x128xf32> -> vector<128x128xf32>
    %c2_48 = arith.constant 2 : index
    %96 = arith.index_cast %arg1 : i32 to index
    %97 = memref.load %arg2[%c2_48, %96] : memref<3x2xf32, #tpu.memory_space<smem>>
    %98 = vector.broadcast %97 : f32 to vector<128x128xf32>
    %99 = arith.mulf %95, %98 : vector<128x128xf32>
    %c2_49 = arith.constant 2 : index
    %100 = arith.index_cast %arg1 : i32 to index
    %101 = memref.load %arg3[%c2_49, %100] : memref<3x2xf32, #tpu.memory_space<smem>>
    %102 = vector.broadcast %101 : f32 to vector<128x128xf32>
    %103 = arith.addf %99, %102 : vector<128x128xf32>
    %104 = arith.truncf %103 : vector<128x128xf32> to vector<128x128xbf16>
    %cst_50 = arith.constant dense<0.000000e+00> : vector<128x128xf32>
    %105 = tpu.matmul %104, %2, %cst_50 {dimension_numbers = #tpu.dot_dimension_numbers<[1], [0], [0], [1], [0, 0, 1, 1], [], []>} : vector<128x128xbf16>, vector<128x128xbf16>, vector<128x128xf32> -> vector<128x128xf32>
    %106 = arith.subf %103, %105 : vector<128x128xf32>
    %107 = arith.mulf %106, %106 : vector<128x128xf32>
    %108 = arith.truncf %107 : vector<128x128xf32> to vector<128x128xbf16>
    %cst_51 = arith.constant dense<0.000000e+00> : vector<128x128xf32>
    %109 = tpu.matmul %108, %2, %cst_51 {dimension_numbers = #tpu.dot_dimension_numbers<[1], [0], [0], [1], [0, 0, 1, 1], [], []>} : vector<128x128xbf16>, vector<128x128xbf16>, vector<128x128xf32> -> vector<128x128xf32>
    %cst_52 = arith.constant 9.99999974E-6 : f32
    %110 = vector.broadcast %cst_52 : f32 to vector<128x128xf32>
    %111 = arith.addf %109, %110 : vector<128x128xf32>
    %112 = math.rsqrt %111 : vector<128x128xf32>
    %113 = arith.mulf %106, %112 : vector<128x128xf32>
    %c2_53 = arith.constant 2 : index
    %c0_54 = arith.constant 0 : index
    %c0_55 = arith.constant 0 : index
    %114 = vector.load %arg8[%c2_53, %c0_54, %c0_55] : memref<3x1x128xf32, #tpu.memory_space<vmem>>, vector<1x1x128xf32>
    %115 = vector.shape_cast %114 : vector<1x1x128xf32> to vector<1x128xf32>
    %116 = vector.broadcast %115 : vector<1x128xf32> to vector<128x128xf32>
    %117 = arith.mulf %113, %116 : vector<128x128xf32>
    %c2_56 = arith.constant 2 : index
    %c0_57 = arith.constant 0 : index
    %c0_58 = arith.constant 0 : index
    %118 = vector.load %arg9[%c2_56, %c0_57, %c0_58] : memref<3x1x128xf32, #tpu.memory_space<vmem>>, vector<1x1x128xf32>
    %119 = vector.shape_cast %118 : vector<1x1x128xf32> to vector<1x128xf32>
    %120 = vector.broadcast %119 : vector<1x128xf32> to vector<128x128xf32>
    %121 = arith.addf %117, %120 : vector<128x128xf32>
    %cst_59 = arith.constant 0.000000e+00 : f32
    %122 = vector.broadcast %cst_59 : f32 to vector<128x128xf32>
    %123 = arith.maximumf %121, %122 : vector<128x128xf32>
    %cst_60 = arith.constant 1.000000e+00 : f32
    %124 = vector.shape_cast %5 : vector<1x128xi1> to vector<1x128xi1>
    %125 = vector.broadcast %124 : vector<1x128xi1> to vector<128x128xi1>
    %126 = vector.broadcast %cst_60 : f32 to vector<128x128xf32>
    %127 = arith.select %125, %123, %126 : vector<128x128xi1>, vector<128x128xf32>
    %128 = arith.mulf %103, %127 : vector<128x128xf32>
    %c2_61 = arith.constant 2 : index
    %c0_62 = arith.constant 0 : index
    %c0_63 = arith.constant 0 : index
    %129 = vector.load %arg7[%c2_61, %c0_62, %c0_63] : memref<3x1x128xf32, #tpu.memory_space<vmem>>, vector<1x1x128xf32>
    %130 = vector.shape_cast %129 : vector<1x1x128xf32> to vector<1x128xf32>
    %131 = vector.broadcast %130 : vector<1x128xf32> to vector<128x128xf32>
    %132 = arith.addf %128, %131 : vector<128x128xf32>
    %133 = arith.mulf %1, %132 : vector<128x128xf32>
    %134 = arith.addf %133, %91 : vector<128x128xf32>
    %c0_64 = arith.constant 0 : index
    %c0_65 = arith.constant 0 : index
    %135 = vector.load %arg12[%c0_64, %c0_65] : memref<4x128xbf16, #tpu.memory_space<vmem>>, vector<4x128xbf16>
    %136 = arith.truncf %134 : vector<128x128xf32> to vector<128x128xbf16>
    %cst_66 = arith.constant dense<0.000000e+00> : vector<4x128xf32>
    %137 = tpu.matmul %135, %136, %cst_66 {dimension_numbers = #tpu.dot_dimension_numbers<[1], [1], [0], [0], [0, 0, 1, 0], [], []>} : vector<4x128xbf16>, vector<128x128xbf16>, vector<4x128xf32> -> vector<4x128xf32>
    %c0_67 = arith.constant 0 : index
    %138 = memref.load %arg4[%c0_67] : memref<1xf32, #tpu.memory_space<smem>>
    %139 = vector.broadcast %138 : f32 to vector<4x128xf32>
    %140 = arith.addf %137, %139 : vector<4x128xf32>
    %c0_68 = arith.constant 0 : index
    %c0_69 = arith.constant 0 : index
    %c0_70 = arith.constant 0 : index
    %141 = vector.load %arg13[%c0_68, %c0_69, %c0_70] : memref<1x4x128xf32, #tpu.memory_space<vmem>>, vector<1x4x128xf32>
    %142 = vector.shape_cast %141 : vector<1x4x128xf32> to vector<4x128xf32>
    %143 = vector.shape_cast %140 : vector<4x128xf32> to vector<1x4x128xf32>
    tpu.vector_store %arg13[%c0_68, %c0_69, %c0_70], %143 {strides = array<i32>} : memref<1x4x128xf32, #tpu.memory_space<vmem>>, vector<1x4x128xf32>,
    return
  }
  func.func @transform_0(%arg0: i32, %arg1: i32, %arg2: memref<3x2xf32, #tpu.memory_space<smem>>, %arg3: memref<3x2xf32, #tpu.memory_space<smem>>, %arg4: memref<1xf32, #tpu.memory_space<smem>>) -> (i32, i32, i32) {
    %c0_i32 = arith.constant 0 : i32
    %c0_i32_0 = arith.constant 0 : i32
    return %arg1, %arg0, %c0_i32 : i32, i32, i32
  }
  func.func @transform_1(%arg0: i32, %arg1: i32, %arg2: memref<3x2xf32, #tpu.memory_space<smem>>, %arg3: memref<3x2xf32, #tpu.memory_space<smem>>, %arg4: memref<1xf32, #tpu.memory_space<smem>>) -> (i32, i32, i32) {
    %c0_i32 = arith.constant 0 : i32
    %c0_i32_0 = arith.constant 0 : i32
    %c0_i32_1 = arith.constant 0 : i32
    %c0_i32_2 = arith.constant 0 : i32
    return %c0_i32, %c0_i32_0, %c0_i32_1 : i32, i32, i32
  }
  func.func @transform_2(%arg0: i32, %arg1: i32, %arg2: memref<3x2xf32, #tpu.memory_space<smem>>, %arg3: memref<3x2xf32, #tpu.memory_space<smem>>, %arg4: memref<1xf32, #tpu.memory_space<smem>>) -> (i32, i32, i32) {
    %c0_i32 = arith.constant 0 : i32
    %c0_i32_0 = arith.constant 0 : i32
    %c0_i32_1 = arith.constant 0 : i32
    %c0_i32_2 = arith.constant 0 : i32
    return %c0_i32, %c0_i32_0, %c0_i32_1 : i32, i32, i32
  }
  func.func @transform_3(%arg0: i32, %arg1: i32, %arg2: memref<3x2xf32, #tpu.memory_space<smem>>, %arg3: memref<3x2xf32, #tpu.memory_space<smem>>, %arg4: memref<1xf32, #tpu.memory_space<smem>>) -> (i32, i32, i32) {
    %c0_i32 = arith.constant 0 : i32
    %c0_i32_0 = arith.constant 0 : i32
    %c0_i32_1 = arith.constant 0 : i32
    %c0_i32_2 = arith.constant 0 : i32
    return %c0_i32, %c0_i32_0, %c0_i32_1 : i32, i32, i32
  }
  func.func @transform_4(%arg0: i32, %arg1: i32, %arg2: memref<3x2xf32, #tpu.memory_space<smem>>, %arg3: memref<3x2xf32, #tpu.memory_space<smem>>, %arg4: memref<1xf32, #tpu.memory_space<smem>>) -> (i32, i32, i32) {
    %c0_i32 = arith.constant 0 : i32
    %c0_i32_0 = arith.constant 0 : i32
    %c0_i32_1 = arith.constant 0 : i32
    %c0_i32_2 = arith.constant 0 : i32
    return %c0_i32, %c0_i32_0, %c0_i32_1 : i32, i32, i32
  }
  func.func @transform_5(%arg0: i32, %arg1: i32, %arg2: memref<3x2xf32, #tpu.memory_space<smem>>, %arg3: memref<3x2xf32, #tpu.memory_space<smem>>, %arg4: memref<1xf32, #tpu.memory_space<smem>>) -> (i32, i32) {
    %c0_i32 = arith.constant 0 : i32
    %c0_i32_0 = arith.constant 0 : i32
    %c0_i32_1 = arith.constant 0 : i32
    return %c0_i32, %c0_i32_0 : i32, i32
  }
  func.func @transform_6(%arg0: i32, %arg1: i32, %arg2: memref<3x2xf32, #tpu.memory_space<smem>>, %arg3: memref<3x2xf32, #tpu.memory_space<smem>>, %arg4: memref<1xf32, #tpu.memory_space<smem>>) -> (i32, i32) {
    %c0_i32 = arith.constant 0 : i32
    %c0_i32_0 = arith.constant 0 : i32
    %c0_i32_1 = arith.constant 0 : i32
    return %c0_i32, %c0_i32_0 : i32, i32
  }
  func.func @transform_7(%arg0: i32, %arg1: i32, %arg2: memref<3x2xf32, #tpu.memory_space<smem>>, %arg3: memref<3x2xf32, #tpu.memory_space<smem>>, %arg4: memref<1xf32, #tpu.memory_space<smem>>) -> (i32, i32) {
    %c0_i32 = arith.constant 0 : i32
    %c0_i32_0 = arith.constant 0 : i32
    %c0_i32_1 = arith.constant 0 : i32
    return %c0_i32, %c0_i32_0 : i32, i32
  }
  func.func @transform_8(%arg0: i32, %arg1: i32, %arg2: memref<3x2xf32, #tpu.memory_space<smem>>, %arg3: memref<3x2xf32, #tpu.memory_space<smem>>, %arg4: memref<1xf32, #tpu.memory_space<smem>>) -> (i32, i32, i32) {
    %c0_i32 = arith.constant 0 : i32
    %c0_i32_0 = arith.constant 0 : i32
    return %arg1, %c0_i32, %arg0 : i32, i32, i32
  }
}

</mosaic_0001>

<llo_original>
// kernel: tpu_custom_call.1
$region0: #{tpu_custom_call.1}
  #allocation0 [shape = 'u32[]', space=smem, size = 0x4, offset = 0x4, fixed_abs, tag = 'smem constant byte address 0x4 - core index']
  #allocation1 [shape = 'u32[144,128]{1,0:T(1,128)}', space=vmem, size = 0x12000, scoped, tag = 'internal scratch']
  #allocation2 [shape = 's32[1]{0}', space=sflag, size = 0x4, scoped, tag = 'scoped memory for tpu_custom_call.1']
  #allocation3 [shape = 'u8[2048]{0}', space=smem, size = 0x800, scoped, tag = 'prefetched SMEM operand 0']
  #allocation4 [shape = 'u8[2048]{0}', space=smem, size = 0x800, scoped, tag = 'prefetched SMEM operand 1']
  #allocation5 [shape = 'f32[1]{0:T(128)S(6)}', space=smem, size = 0x200, scoped, tag = 'prefetched SMEM operand 2']
  %s0 = inlined_call_operand.vmem [shape: f32[3,2], index: 0, kind: input, shape index: {}]
  %s1 = inlined_call_operand.vmem [shape: f32[3,2], index: 1, kind: input, shape index: {}]
  %s2 = inlined_call_operand.<no memory space> [shape: f32[1], index: 2, kind: input, shape index: {}]
  %s3 = inlined_call_operand.hbm [shape: f32[2,512,128], index: 3, kind: input, shape index: {}]
  %s4 = inlined_call_operand.hbm [shape: bf16[3,128,128], index: 4, kind: input, shape index: {}]
  %s5 = inlined_call_operand.vmem [shape: f32[3,1,128], index: 5, kind: input, shape index: {}]
  %s6 = inlined_call_operand.vmem [shape: f32[3,1,128], index: 6, kind: input, shape index: {}]
  %s7 = inlined_call_operand.vmem [shape: f32[3,1,128], index: 7, kind: input, shape index: {}]
  %s8 = inlined_call_operand.hbm [shape: bf16[128,128], index: 8, kind: input, shape index: {}]
  %s9 = inlined_call_operand.vmem [shape: f32[1,128], index: 9, kind: input, shape index: {}]
  %s10 = inlined_call_operand.vmem [shape: bf16[4,128], index: 10, kind: input, shape index: {}]
  %s11 = inlined_call_operand.hbm [shape: f32[2,4,512], index: 11, kind: output, shape index: {}]
  %s12 = sld [smem:[#allocation0]]
  $region77: #{tpu_custom_call.1} parent=0
    _
  %s14 = ssub.s32 1, %s12
  %s15 = scalar_select 0, %s14, %s12
  %s16 = sshll.u32 %s0, 4
  %s17 = int_to_ptr.vmem [resolvable:$true] %s16
  %19 = dma.vmem_to_smem %s17, 64, [#allocation3], [#allocation2]
  %s20 = sshll.u32 %s1, 4
  %s21 = int_to_ptr.vmem [resolvable:$true] %s20
  %23 = dma.vmem_to_smem %s21, 64, [#allocation4], [#allocation2]
  %24 = sst [smem:[#allocation5]] %s2
  %25 = dma.done [#allocation2], 128
  %26 = sfence
  $region1: #{tpu_custom_call.1} parent=0
    #allocation6 [shape = 'u8[131072]{0}', space=vmem, size = 0x20000, scoped, tag = 'input window, operand 3']
    #allocation7 [shape = 's32[2]{0}', space=sflag, size = 0x8, scoped, tag = 'scoped memory for tpu_custom_call.1']
    #allocation8 [shape = 's32[2]{0}', space=sflag, size = 0x8, scoped, tag = 'scoped memory for tpu_custom_call.1']
    #allocation9 [shape = 'u8[98304]{0}', space=vmem, size = 0x18000, scoped, tag = 'input window, operand 4, single buffered']
    #allocation10 [shape = 's32[1]{0}', space=sflag, size = 0x4, scoped, tag = 'scoped memory for tpu_custom_call.1']
    #allocation11 [shape = 'u8[32768]{0}', space=vmem, size = 0x8000, scoped, tag = 'input window, operand 8, single buffered']
    #allocation12 [shape = 'u8[4096]{0}', space=vmem, size = 0x1000, scoped, tag = 'output window, operand 0']
    %27 = vsyncpa [#allocation7], 0
    %s28 = scalar_lea.sflag [#allocation7], 1
    %29 = vsyncpa %s28, 0
    %30 = vsyncpa [#allocation10], 0
    %31 = vsyncpa [#allocation8], 0
    %s32 = scalar_lea.sflag [#allocation8], 1
    %33 = vsyncpa %s32, 0
    loop: start=0, step=1, limit=10
    $region2: #{tpu_custom_call.1} parent=1 // loop_pre_header
      _
    $region3: #{tpu_custom_call.1} parent=1 // loop_header
      %s35 = sphi 0, %s39
      %p36 = scmp.ge.s32.totalorder %s35, 10
      %s42 = sphi 0, %s54
      %s43 = sphi 0, %s50
      %s44 = sphi 0, %s42
      %s45 = sphi 0, %s43
      %s46 = sphi 0, %s44
      %s47 = sphi 0, %s45
      %s59 = sphi 0, %s61
      %s62 = sphi 0, %s59
      %s63 = sphi 0, %s62
      %s79 = sphi 0, %s63
      %s83 = sphi 0, %s83
      %s85 = sphi 0, %s83
      %s86 = sphi 0, %s85
      %s100 = sphi 0, %s86
      %s104 = sphi 0, %s104
      %s106 = sphi 0, %s104
      %s107 = sphi 0, %s106
      %s121 = sphi 0, %s107
      %s125 = sphi 0, %s125
      %s127 = sphi 0, %s125
      %s128 = sphi 0, %s127
      %s142 = sphi 0, %s128
      %s146 = sphi 0, %s146
      %s148 = sphi 0, %s146
      %s149 = sphi 0, %s148
      %s163 = sphi 0, %s149
      %s167 = sphi 0, %s167
      %s169 = sphi 0, %s167
      %s170 = sphi 0, %s169
      %s184 = sphi 0, %s170
      %s188 = sphi 0, %s188
      %s190 = sphi 0, %s188
      %s191 = sphi 0, %s190
      %s205 = sphi 0, %s191
      %s209 = sphi 0, %s209
      %s211 = sphi 0, %s209
      %s212 = sphi 0, %s211
      %s226 = sphi 0, %s212
      %s234 = sphi 0, %s236
      %s237 = sphi 0, %s234
      %s238 = sphi 0, %s237
      %s254 = sphi 0, %s238
    $region4: #{tpu_custom_call.1} parent=1 // loop_header_branch
      %38 = sbr.rel (%p36) target = $region8
    $region5: #{tpu_custom_call.1} parent=1 // loop_body
      %s40 = ssub.s32 %s35, 1
      %s41 = ssub.s32 %s35, 2
      %s48 = sadd.s32 1, %s43
      %p49 = scmp.ge.s32.totalorder %s48, 2
      %s50 = scalar_select %p49, 0, %s48
      %s51 = sadd.s32 1, %s42
      %s52 = scalar_select %p49, %s51, %s42
      %p53 = scmp.ge.s32.totalorder %s52, 4
      %s54 = scalar_select %p53, 0, %s52
      %s55 = ssub.s32 %s43, %s50
      %s56 = ssub.s32 %s42, %s54
      %s57 = sor.u32 %s55, %s56
      %p58 = scmp.eq.s32.totalorder %s57, 0
      %s60 = sadd.s32 %s59, 1
      %s61 = scalar_select %p58, %s59, %s60
      %p64 = pneg %p58
      %p65 = scmp.eq.s32.totalorder %s35, 7
      %p66 = por %p64, %p65
      %p67 = scmp.ne.s32.totalorder %s59, %s62
      %p68 = scmp.eq.s32.totalorder %s35, 0
      %p69 = por %p67, %p68
      %p70 = scmp.ne.s32.totalorder %s59, %s62
      %p71 = scmp.eq.s32.totalorder %s40, 7
      %p72 = por %p70, %p71
      %p73 = scmp.ne.s32.totalorder %s62, %s63
      %p74 = scmp.eq.s32.totalorder %s40, 0
      %p75 = por %p73, %p74
      %p76 = scmp.ne.s32.totalorder %s62, %s63
      %p77 = scmp.eq.s32.totalorder %s41, 7
      %p78 = por %p76, %p77
      %p80 = scmp.ne.s32.totalorder %s63, %s79
      %p81 = scmp.eq.s32.totalorder %s41, 0
      %p82 = por %p80, %p81
      %s84 = sadd.s32 %s83, 1
      %p87 = scmp.eq.s32.totalorder %s35, 7
      %p88 = scmp.ne.s32.totalorder %s83, %s85
      %p89 = scmp.eq.s32.totalorder %s35, 0
      %p90 = por %p88, %p89
      %p91 = scmp.ne.s32.totalorder %s83, %s85
      %p92 = scmp.eq.s32.totalorder %s40, 7
      %p93 = por %p91, %p92
      %p94 = scmp.ne.s32.totalorder %s85, %s86
      %p95 = scmp.eq.s32.totalorder %s40, 0
      %p96 = por %p94, %p95
      %p97 = scmp.ne.s32.totalorder %s85, %s86
      %p98 = scmp.eq.s32.totalorder %s41, 7
      %p99 = por %p97, %p98
      %p101 = scmp.ne.s32.totalorder %s86, %s100
      %p102 = scmp.eq.s32.totalorder %s41, 0
      %p103 = por %p101, %p102
      %s105 = sadd.s32 %s104, 1
      %p108 = scmp.eq.s32.totalorder %s35, 7
      %p109 = scmp.ne.s32.totalorder %s104, %s106
      %p110 = scmp.eq.s32.totalorder %s35, 0
      %p111 = por %p109, %p110
      %p112 = scmp.ne.s32.totalorder %s104, %s106
      %p113 = scmp.eq.s32.totalorder %s40, 7
      %p114 = por %p112, %p113
      %p115 = scmp.ne.s32.totalorder %s106, %s107
      %p116 = scmp.eq.s32.totalorder %s40, 0
      %p117 = por %p115, %p116
      %p118 = scmp.ne.s32.totalorder %s106, %s107
      %p119 = scmp.eq.s32.totalorder %s41, 7
      %p120 = por %p118, %p119
      %p122 = scmp.ne.s32.totalorder %s107, %s121
      %p123 = scmp.eq.s32.totalorder %s41, 0
      %p124 = por %p122, %p123
      %s126 = sadd.s32 %s125, 1
      %p129 = scmp.eq.s32.totalorder %s35, 7
      %p130 = scmp.ne.s32.totalorder %s125, %s127
      %p131 = scmp.eq.s32.totalorder %s35, 0
      %p132 = por %p130, %p131
      %p133 = scmp.ne.s32.totalorder %s125, %s127
      %p134 = scmp.eq.s32.totalorder %s40, 7
      %p135 = por %p133, %p134
      %p136 = scmp.ne.s32.totalorder %s127, %s128
      %p137 = scmp.eq.s32.totalorder %s40, 0
      %p138 = por %p136, %p137
      %p139 = scmp.ne.s32.totalorder %s127, %s128
      %p140 = scmp.eq.s32.totalorder %s41, 7
      %p141 = por %p139, %p140
      %p143 = scmp.ne.s32.totalorder %s128, %s142
      %p144 = scmp.eq.s32.totalorder %s41, 0
      %p145 = por %p143, %p144
      %s147 = sadd.s32 %s146, 1
      %p150 = scmp.eq.s32.totalorder %s35, 7
      %p151 = scmp.ne.s32.totalorder %s146, %s148
      %p152 = scmp.eq.s32.totalorder %s35, 0
      %p153 = por %p151, %p152
      %p154 = scmp.ne.s32.totalorder %s146, %s148
      %p155 = scmp.eq.s32.totalorder %s40, 7
      %p156 = por %p154, %p155
      %p157 = scmp.ne.s32.totalorder %s148, %s149
      %p158 = scmp.eq.s32.totalorder %s40, 0
      %p159 = por %p157, %p158
      %p160 = scmp.ne.s32.totalorder %s148, %s149
      %p161 = scmp.eq.s32.totalorder %s41, 7
      %p162 = por %p160, %p161
      %p164 = scmp.ne.s32.totalorder %s149, %s163
      %p165 = scmp.eq.s32.totalorder %s41, 0
      %p166 = por %p164, %p165
      %s168 = sadd.s32 %s167, 1
      %p171 = scmp.eq.s32.totalorder %s35, 7
      %p172 = scmp.ne.s32.totalorder %s167, %s169
      %p173 = scmp.eq.s32.totalorder %s35, 0
      %p174 = por %p172, %p173
      %p175 = scmp.ne.s32.totalorder %s167, %s169
      %p176 = scmp.eq.s32.totalorder %s40, 7
      %p177 = por %p175, %p176
      %p178 = scmp.ne.s32.totalorder %s169, %s170
      %p179 = scmp.eq.s32.totalorder %s40, 0
      %p180 = por %p178, %p179
      %p181 = scmp.ne.s32.totalorder %s169, %s170
      %p182 = scmp.eq.s32.totalorder %s41, 7
      %p183 = por %p181, %p182
      %p185 = scmp.ne.s32.totalorder %s170, %s184
      %p186 = scmp.eq.s32.totalorder %s41, 0
      %p187 = por %p185, %p186
      %s189 = sadd.s32 %s188, 1
      %p192 = scmp.eq.s32.totalorder %s35, 7
      %p193 = scmp.ne.s32.totalorder %s188, %s190
      %p194 = scmp.eq.s32.totalorder %s35, 0
      %p195 = por %p193, %p194
      %p196 = scmp.ne.s32.totalorder %s188, %s190
      %p197 = scmp.eq.s32.totalorder %s40, 7
      %p198 = por %p196, %p197
      %p199 = scmp.ne.s32.totalorder %s190, %s191
      %p200 = scmp.eq.s32.totalorder %s40, 0
      %p201 = por %p199, %p200
      %p202 = scmp.ne.s32.totalorder %s190, %s191
      %p203 = scmp.eq.s32.totalorder %s41, 7
      %p204 = por %p202, %p203
      %p206 = scmp.ne.s32.totalorder %s191, %s205
      %p207 = scmp.eq.s32.totalorder %s41, 0
      %p208 = por %p206, %p207
      %s210 = sadd.s32 %s209, 1
      %p213 = scmp.eq.s32.totalorder %s35, 7
      %p214 = scmp.ne.s32.totalorder %s209, %s211
      %p215 = scmp.eq.s32.totalorder %s35, 0
      %p216 = por %p214, %p215
      %p217 = scmp.ne.s32.totalorder %s209, %s211
      %p218 = scmp.eq.s32.totalorder %s40, 7
      %p219 = por %p217, %p218
      %p220 = scmp.ne.s32.totalorder %s211, %s212
      %p221 = scmp.eq.s32.totalorder %s40, 0
      %p222 = por %p220, %p221
      %p223 = scmp.ne.s32.totalorder %s211, %s212
      %p224 = scmp.eq.s32.totalorder %s41, 7
      %p225 = por %p223, %p224
      %p227 = scmp.ne.s32.totalorder %s212, %s226
      %p228 = scmp.eq.s32.totalorder %s41, 0
      %p229 = por %p227, %p228
      %s230 = ssub.s32 %s43, %s50
      %s231 = ssub.s32 %s42, %s54
      %s232 = sor.u32 %s230, %s231
      %p233 = scmp.eq.s32.totalorder %s232, 0
      %s235 = sadd.s32 %s234, 1
      %s236 = scalar_select %p233, %s234, %s235
      %p239 = pneg %p233
      %p240 = scmp.eq.s32.totalorder %s35, 7
      %p241 = por %p239, %p240
      %p242 = scmp.ne.s32.totalorder %s234, %s237
      %p243 = scmp.eq.s32.totalorder %s35, 0
      %p244 = por %p242, %p243
      %p245 = scmp.ne.s32.totalorder %s234, %s237
      %p246 = scmp.eq.s32.totalorder %s40, 7
      %p247 = por %p245, %p246
      %p248 = scmp.ne.s32.totalorder %s237, %s238
      %p249 = scmp.eq.s32.totalorder %s40, 0
      %p250 = por %p248, %p249
      %p251 = scmp.ne.s32.totalorder %s237, %s238
      %p252 = scmp.eq.s32.totalorder %s41, 7
      %p253 = por %p251, %p252
      %p255 = scmp.ne.s32.totalorder %s238, %s254
      %p256 = scmp.eq.s32.totalorder %s41, 0
      %p257 = por %p255, %p256
      %p258 = scmp.le.s32.totalorder 1, %s35
      %p259 = scmp.lt.s32.totalorder %s35, 9
      %p260 = pnand %p258, %p259
      %p261 = pneg %p260
      // Predicated region
      $region9: #{tpu_custom_call.1} parent=5 // pred_check
        _
      $region10: #{tpu_custom_call.1} parent=5 // pred_check_branch
        %263 = sbr.rel (%p260) target = $region12
      $region11: #{tpu_custom_call.1} parent=5 // pred_region
        %s264 = ssub.s32 %s35, 1
        // Predicated region
        $region13: #{tpu_custom_call.1} parent=11 // pred_check
          %p265 = pneg %p96
        $region14: #{tpu_custom_call.1} parent=11 // pred_check_branch
          %267 = sbr.rel (%p265) target = $region16
        $region15: #{tpu_custom_call.1} parent=11 // pred_region
          %s269 = ssub.s32 3072, 3072
          %270 = vsyncadd [#allocation10], %s269
          %s271 = sshll.u32 [#allocation9], 4
          %s272 = int_to_ptr.vmem [resolvable:$true] %s271
          %277 = dma.hbm_to_vmem [thread:$0]  %s4, 3072, %s272, [#allocation10], 64, 64, 4
        $region16: #{tpu_custom_call.1} parent=11 // pred_fallthru
          _
        // Predicated region
        $region17: #{tpu_custom_call.1} parent=11 // pred_check
          %p278 = pneg %p117
        $region18: #{tpu_custom_call.1} parent=11 // pred_check_branch
          %280 = sbr.rel (%p278) target = $region20
        $region19: #{tpu_custom_call.1} parent=11 // pred_region
          _
        $region20: #{tpu_custom_call.1} parent=11 // pred_fallthru
          _
        // Predicated region
        $region21: #{tpu_custom_call.1} parent=11 // pred_check
          %p281 = pneg %p138
        $region22: #{tpu_custom_call.1} parent=11 // pred_check_branch
          %283 = sbr.rel (%p281) target = $region24
        $region23: #{tpu_custom_call.1} parent=11 // pred_region
          _
        $region24: #{tpu_custom_call.1} parent=11 // pred_fallthru
          _
        // Predicated region
        $region25: #{tpu_custom_call.1} parent=11 // pred_check
          %p284 = pneg %p159
        $region26: #{tpu_custom_call.1} parent=11 // pred_check_branch
          %286 = sbr.rel (%p284) target = $region28
        $region27: #{tpu_custom_call.1} parent=11 // pred_region
          _
        $region28: #{tpu_custom_call.1} parent=11 // pred_fallthru
          _
        // Predicated region
        $region29: #{tpu_custom_call.1} parent=11 // pred_check
          %p287 = pneg %p180
        $region30: #{tpu_custom_call.1} parent=11 // pred_check_branch
          %289 = sbr.rel (%p287) target = $region32
        $region31: #{tpu_custom_call.1} parent=11 // pred_region
          %s291 = ssub.s32 1024, 1024
          %292 = vsyncadd [#allocation10], %s291
          %s293 = sshll.u32 [#allocation11], 4
          %s294 = int_to_ptr.vmem [resolvable:$true] %s293
          %299 = dma.hbm_to_vmem [thread:$0]  %s8, 1024, %s294, [#allocation10], 64, 64, 4
        $region32: #{tpu_custom_call.1} parent=11 // pred_fallthru
          _
        // Predicated region
        $region33: #{tpu_custom_call.1} parent=11 // pred_check
          %p300 = pneg %p201
        $region34: #{tpu_custom_call.1} parent=11 // pred_check_branch
          %302 = sbr.rel (%p300) target = $region36
        $region35: #{tpu_custom_call.1} parent=11 // pred_region
          _
        $region36: #{tpu_custom_call.1} parent=11 // pred_fallthru
          _
        // Predicated region
        $region37: #{tpu_custom_call.1} parent=11 // pred_check
          %p303 = pneg %p222
        $region38: #{tpu_custom_call.1} parent=11 // pred_check_branch
          %305 = sbr.rel (%p303) target = $region40
        $region39: #{tpu_custom_call.1} parent=11 // pred_region
          _
        $region40: #{tpu_custom_call.1} parent=11 // pred_fallthru
          _
      $region12: #{tpu_custom_call.1} parent=5 // pred_fallthru
        _
      %p306 = scmp.lt.s32.totalorder %s35, 8
      // Predicated region
      $region41: #{tpu_custom_call.1} parent=5 // pred_check
        %p307 = pneg %p306
      $region42: #{tpu_custom_call.1} parent=5 // pred_check_branch
        %309 = sbr.rel (%p307) target = $region44
      $region43: #{tpu_custom_call.1} parent=5 // pred_region
        // Predicated region
        $region45: #{tpu_custom_call.1} parent=43 // pred_check
          %p310 = pneg %p69
        $region46: #{tpu_custom_call.1} parent=43 // pred_check_branch
          %312 = sbr.rel (%p310) target = $region48
        $region47: #{tpu_custom_call.1} parent=43 // pred_region
          %s313 = sand.u32 %s59, 1
          %s314 = scalar_lea.sflag [#allocation7], %s313
          %s315 = sand.u32 %s59, 1
          %s316 = smul.addr %s315, 128
          %s317 = scalar_lea.vmem [#allocation6], %s316
          %s318 = smul.u32 16, %s42
          %s320 = ssub.s32 2048, 2048
          %321 = vsyncadd %s314, %s320
          %s322 = smul.addr %s43, 64
          %s323 = sadd.s32 %s318, %s322
          %s324 = smul.addr %s323, 128
          %s325 = scalar_lea.hbm %s3, %s324
          %s326 = sshll.u32 %s317, 4
          %s327 = int_to_ptr.vmem [resolvable:$true] %s326
          %332 = dma.hbm_to_vmem [thread:$0]  %s325, 2048, %s327, %s314, 128, 128, 8
        $region48: #{tpu_custom_call.1} parent=43 // pred_fallthru
          _
      $region44: #{tpu_custom_call.1} parent=5 // pred_fallthru
        _
      %p333 = scmp.le.s32.totalorder 1, %s35
      %p334 = scmp.lt.s32.totalorder %s35, 9
      %p335 = pnand %p333, %p334
      %p336 = pneg %p335
      // Predicated region
      $region49: #{tpu_custom_call.1} parent=5 // pred_check
        _
      $region50: #{tpu_custom_call.1} parent=5 // pred_check_branch
        %338 = sbr.rel (%p335) target = $region52
      $region51: #{tpu_custom_call.1} parent=5 // pred_region
        %s339 = ssub.s32 %s35, 1
        %s340 = sand.u32 %s62, 1
        %s341 = scalar_lea.sflag [#allocation7], %s340
        %s342 = sand.u32 %s62, 1
        %s343 = smul.addr %s342, 128
        %s344 = scalar_lea.vmem [#allocation6], %s343
        // Predicated region
        $region53: #{tpu_custom_call.1} parent=51 // pred_check
          %p345 = pneg %p75
        $region54: #{tpu_custom_call.1} parent=51 // pred_check_branch
          %347 = sbr.rel (%p345) target = $region56
        $region55: #{tpu_custom_call.1} parent=51 // pred_region
          %348 = dma.done %s341, 2048
        $region56: #{tpu_custom_call.1} parent=51 // pred_fallthru
          _
        // Predicated region
        $region57: #{tpu_custom_call.1} parent=51 // pred_check
          %p349 = pneg %p96
        $region58: #{tpu_custom_call.1} parent=51 // pred_check_branch
          %351 = sbr.rel (%p349) target = $region60
        $region59: #{tpu_custom_call.1} parent=51 // pred_region
          %352 = dma.done [#allocation10], 3072
        $region60: #{tpu_custom_call.1} parent=51 // pred_fallthru
          _
        // Predicated region
        $region61: #{tpu_custom_call.1} parent=51 // pred_check
          %p353 = pneg %p180
        $region62: #{tpu_custom_call.1} parent=51 // pred_check_branch
          %355 = sbr.rel (%p353) target = $region64
        $region63: #{tpu_custom_call.1} parent=51 // pred_region
          %356 = dma.done [#allocation10], 1024
        $region64: #{tpu_custom_call.1} parent=51 // pred_fallthru
          _
        %s357 = sand.u32 %s62, 1
        %s358 = scalar_lea.sflag [#allocation7], %s357
        %s359 = sand.u32 %s62, 1
        %s360 = smul.addr %s359, 128
        %s361 = scalar_lea.vmem [#allocation6], %s360
        %p362 = pneg %p75
        %p363 = pneg %p72
        %p364 = pneg %p96
        %p365 = pneg %p93
        %p366 = pneg %p117
        %p367 = pneg %p114
        %p368 = pneg %p138
        %p369 = pneg %p135
        %p370 = pneg %p159
        %p371 = pneg %p156
        %p372 = pneg %p180
        %p373 = pneg %p177
        %p374 = pneg %p201
        %p375 = pneg %p198
        %p376 = pneg %p222
        %p377 = pneg %p219
        %p378 = pneg %p250
        %p379 = pneg %p247
        %s380 = sand.u32 %s237, 1
        %s381 = scalar_lea.sflag [#allocation8], %s380
        %s382 = sand.u32 %s237, 1
        %s383 = smul.addr %s382, 4
        %s384 = scalar_lea.vmem [#allocation12], %s383
        %s385 = smul.u32 16, %s44
        %v387 = vld [vmem:[%s344] sm:$0xff]
        %v388 = vld [vmem:[%s344 + $0x8] sm:$0xff]
        %v389 = vld [vmem:[%s344 + $0x10] sm:$0xff]
        %v390 = vld [vmem:[%s344 + $0x18] sm:$0xff]
        %v391 = vld [vmem:[%s344 + $0x20] sm:$0xff]
        %v392 = vld [vmem:[%s344 + $0x28] sm:$0xff]
        %v393 = vld [vmem:[%s344 + $0x30] sm:$0xff]
        %v394 = vld [vmem:[%s344 + $0x38] sm:$0xff]
        %v395 = vld [vmem:[%s344 + $0x40] sm:$0xff]
        %v396 = vld [vmem:[%s344 + $0x48] sm:$0xff]
        %v397 = vld [vmem:[%s344 + $0x50] sm:$0xff]
        %v398 = vld [vmem:[%s344 + $0x58] sm:$0xff]
        %v399 = vld [vmem:[%s344 + $0x60] sm:$0xff]
        %v400 = vld [vmem:[%s344 + $0x68] sm:$0xff]
        %v401 = vld [vmem:[%s344 + $0x70] sm:$0xff]
        %v402 = vld [vmem:[%s344 + $0x78] sm:$0xff]
        %v403 = vld [vmem:[#allocation11] sm:$0xf]
        %v404 = vld [vmem:[#allocation11 + $0x4] sm:$0xf]
        %v405 = vld [vmem:[#allocation11 + $0x8] sm:$0xf]
        %v406 = vld [vmem:[#allocation11 + $0xc] sm:$0xf]
        %v407 = vld [vmem:[#allocation11 + $0x10] sm:$0xf]
        %v408 = vld [vmem:[#allocation11 + $0x14] sm:$0xf]
        %v409 = vld [vmem:[#allocation11 + $0x18] sm:$0xf]
        %v410 = vld [vmem:[#allocation11 + $0x1c] sm:$0xf]
        %v411 = vld [vmem:[#allocation11 + $0x20] sm:$0xf]
        %v412 = vld [vmem:[#allocation11 + $0x24] sm:$0xf]
        %v413 = vld [vmem:[#allocation11 + $0x28] sm:$0xf]
        %v414 = vld [vmem:[#allocation11 + $0x2c] sm:$0xf]
        %v415 = vld [vmem:[#allocation11 + $0x30] sm:$0xf]
        %v416 = vld [vmem:[#allocation11 + $0x34] sm:$0xf]
        %v417 = vld [vmem:[#allocation11 + $0x38] sm:$0xf]
        %v418 = vld [vmem:[#allocation11 + $0x3c] sm:$0xf]
        %v419 = vld [vmem:[%s9] sm:$0x1]
        %vm420 = vcmp.ne.f32.partialorder %v419, 0.0
        %v421 = vpack.c.bf16 %v388, %v387
        %v422 = vpack.c.bf16 %v390, %v389
        %v423 = vpack.c.bf16 %v392, %v391
        %v424 = vpack.c.bf16 %v394, %v393
        %v425 = vpack.c.bf16 %v396, %v395
        %v426 = vpack.c.bf16 %v398, %v397
        %v427 = vpack.c.bf16 %v400, %v399
        %v428 = vpack.c.bf16 %v402, %v401
        %v429 = vld [vmem:[#allocation9] sm:$0xf]
        %v430 = vld [vmem:[#allocation9 + $0x4] sm:$0xf]
        %v431 = vld [vmem:[#allocation9 + $0x8] sm:$0xf]
        %v432 = vld [vmem:[#allocation9 + $0xc] sm:$0xf]
        %v433 = vld [vmem:[#allocation9 + $0x10] sm:$0xf]
        %v434 = vld [vmem:[#allocation9 + $0x14] sm:$0xf]
        %v435 = vld [vmem:[#allocation9 + $0x18] sm:$0xf]
        %v436 = vld [vmem:[#allocation9 + $0x1c] sm:$0xf]
        %v437 = vld [vmem:[#allocation9 + $0x20] sm:$0xf]
        %v438 = vld [vmem:[#allocation9 + $0x24] sm:$0xf]
        %v439 = vld [vmem:[#allocation9 + $0x28] sm:$0xf]
        %v440 = vld [vmem:[#allocation9 + $0x2c] sm:$0xf]
        %v441 = vld [vmem:[#allocation9 + $0x30] sm:$0xf]
        %v442 = vld [vmem:[#allocation9 + $0x34] sm:$0xf]
        %v443 = vld [vmem:[#allocation9 + $0x38] sm:$0xf]
        %v444 = vld [vmem:[#allocation9 + $0x3c] sm:$0xf]
        %v461 = vunpack.c.l.b16 %v429
        %v462 = vunpack.c.l.b16 %v430
        %v463 = vunpack.c.l.b16 %v431
        %v464 = vunpack.c.l.b16 %v432
        %v465 = vunpack.c.l.b16 %v433
        %v466 = vunpack.c.l.b16 %v434
        %v467 = vunpack.c.l.b16 %v435
        %v468 = vunpack.c.l.b16 %v436
        %v469 = vunpack.c.l.b16 %v437
        %v470 = vunpack.c.l.b16 %v438
        %v471 = vunpack.c.l.b16 %v439
        %v472 = vunpack.c.l.b16 %v440
        %v473 = vunpack.c.l.b16 %v441
        %v474 = vunpack.c.l.b16 %v442
        %v475 = vunpack.c.l.b16 %v443
        %v476 = vunpack.c.l.b16 %v444
        %v477 = vpack.c.b16 %v462, %v461
        %v478 = vpack.c.b16 %v464, %v463
        %v479 = vpack.c.b16 %v466, %v465
        %v480 = vpack.c.b16 %v468, %v467
        %v481 = vpack.c.b16 %v470, %v469
        %v482 = vpack.c.b16 %v472, %v471
        %v483 = vpack.c.b16 %v474, %v473
        %v484 = vpack.c.b16 %v476, %v475
        %493 = vmatprep.subr.bf16.mxu0 0
        %494 = vmatpush1.bf16.msra.mxu0 %v477
        %495 = vmatprep.subr.bf16.mxu0 0
        %496 = vmatpush1.bf16.msra.mxu0 %v478
        %497 = vmatprep.subr.bf16.mxu0 0
        %498 = vmatpush1.bf16.msra.mxu0 %v479
        %499 = vmatprep.subr.bf16.mxu0 0
        %500 = vmatpush1.bf16.msra.mxu0 %v480
        %501 = vmatprep.subr.bf16.mxu0 0
        %502 = vmatpush1.bf16.msra.mxu0 %v481
        %503 = vmatprep.subr.bf16.mxu0 0
        %504 = vmatpush1.bf16.msra.mxu0 %v482
        %505 = vmatprep.subr.bf16.mxu0 0
        %506 = vmatpush1.bf16.msra.mxu0 %v483
        %507 = vmatprep.subr.bf16.mxu0 0
        %508 = vmatpush1.bf16.msra.mxu0 %v484
        %509 = vmatprep.subr.bf16.mxu0 0
        %510 = vmatpush1.bf16.msra.mxu0 0
        %511 = vmatprep.subr.bf16.mxu0 0
        %512 = vmatpush1.bf16.msra.mxu0 0
        %513 = vmatprep.subr.bf16.mxu0 0
        %514 = vmatpush1.bf16.msra.mxu0 0
        %515 = vmatprep.subr.bf16.mxu0 0
        %516 = vmatpush1.bf16.msra.mxu0 0
        %517 = vmatprep.subr.bf16.mxu0 0
        %518 = vmatpush1.bf16.msra.mxu0 0
        %519 = vmatprep.subr.bf16.mxu0 0
        %520 = vmatpush1.bf16.msra.mxu0 0
        %521 = vmatprep.subr.bf16.mxu0 0
        %522 = vmatpush1.bf16.msra.mxu0 0
        %523 = vmatprep.subr.bf16.mxu0 0
        %524 = vmatpush1.bf16.msra.mxu0 0
        %525 = vmatprep.mubr.bf16.mxu0 0
        %526 = vmatmul.mubr.bf16.gmra.mrb[0].mxu0 %v421
        %v527 = vpop.f32.mrb[0].mxu0
        %v528 = vadd.f32 0.0, %v527
        %v529 = vpop.f32.mrb[0].mxu0
        %v530 = vpop.f32.mrb[0].mxu0
        %v531 = vadd.f32 0.0, %v530
        %v532 = vpop.f32.mrb[0].mxu0
        %533 = vmatprep.mubr.bf16.mxu0 0
        %534 = vmatmul.mubr.bf16.gmra.mrb[0].mxu0 %v422
        %v535 = vpop.f32.mrb[0].mxu0
        %v536 = vadd.f32 0.0, %v535
        %v537 = vpop.f32.mrb[0].mxu0
        %v538 = vpop.f32.mrb[0].mxu0
        %v539 = vadd.f32 0.0, %v538
        %v540 = vpop.f32.mrb[0].mxu0
        %541 = vmatprep.mubr.bf16.mxu0 0
        %542 = vmatmul.mubr.bf16.gmra.mrb[0].mxu0 %v423
        %v543 = vpop.f32.mrb[0].mxu0
        %v544 = vadd.f32 0.0, %v543
        %v545 = vpop.f32.mrb[0].mxu0
        %v546 = vpop.f32.mrb[0].mxu0
        %v547 = vadd.f32 0.0, %v546
        %v548 = vpop.f32.mrb[0].mxu0
        %549 = vmatprep.mubr.bf16.mxu0 0
        %550 = vmatmul.mubr.bf16.gmra.mrb[0].mxu0 %v424
        %v551 = vpop.f32.mrb[0].mxu0
        %v552 = vadd.f32 0.0, %v551
        %v553 = vpop.f32.mrb[0].mxu0
        %v554 = vpop.f32.mrb[0].mxu0
        %v555 = vadd.f32 0.0, %v554
        %v556 = vpop.f32.mrb[0].mxu0
        %557 = vmatprep.mubr.bf16.mxu0 0
        %558 = vmatmul.mubr.bf16.gmra.mrb[0].mxu0 %v425
        %v559 = vpop.f32.mrb[0].mxu0
        %v560 = vadd.f32 0.0, %v559
        %v561 = vpop.f32.mrb[0].mxu0
        %v562 = vpop.f32.mrb[0].mxu0
        %v563 = vadd.f32 0.0, %v562
        %v564 = vpop.f32.mrb[0].mxu0
        %565 = vmatprep.mubr.bf16.mxu0 0
        %566 = vmatmul.mubr.bf16.gmra.mrb[0].mxu0 %v426
        %v567 = vpop.f32.mrb[0].mxu0
        %v568 = vadd.f32 0.0, %v567
        %v569 = vpop.f32.mrb[0].mxu0
        %v570 = vpop.f32.mrb[0].mxu0
        %v571 = vadd.f32 0.0, %v570
        %v572 = vpop.f32.mrb[0].mxu0
        %573 = vmatprep.mubr.bf16.mxu0 0
        %574 = vmatmul.mubr.bf16.gmra.mrb[0].mxu0 %v427
        %v575 = vpop.f32.mrb[0].mxu0
        %v576 = vadd.f32 0.0, %v575
        %v577 = vpop.f32.mrb[0].mxu0
        %v578 = vpop.f32.mrb[0].mxu0
        %v579 = vadd.f32 0.0, %v578
        %v580 = vpop.f32.mrb[0].mxu0
        %581 = vmatprep.mubr.bf16.mxu0 0
        %582 = vmatmul.mubr.bf16.gmra.mrb[0].mxu0 %v428
        %v583 = vpop.f32.mrb[0].mxu0
        %v584 = vadd.f32 0.0, %v583
        %v585 = vpop.f32.mrb[0].mxu0
        %v586 = vpop.f32.mrb[0].mxu0
        %v587 = vadd.f32 0.0, %v586
        %v588 = vpop.f32.mrb[0].mxu0
        %589 = vdwg.mxu0
        %s590 = sld [smem:[#allocation3 + %s45]]
        %v591 = vstv %s590
        %v592 = vmul.f32 %v528, %v591
        %v593 = vmul.f32 %v531, %v591
        %v594 = vmul.f32 %v536, %v591
        %v595 = vmul.f32 %v539, %v591
        %v596 = vmul.f32 %v544, %v591
        %v597 = vmul.f32 %v547, %v591
        %v598 = vmul.f32 %v552, %v591
        %v599 = vmul.f32 %v555, %v591
        %v600 = vmul.f32 %v560, %v591
        %v601 = vmul.f32 %v563, %v591
        %v602 = vmul.f32 %v568, %v591
        %v603 = vmul.f32 %v571, %v591
        %v604 = vmul.f32 %v576, %v591
        %v605 = vmul.f32 %v579, %v591
        %v606 = vmul.f32 %v584, %v591
        %v607 = vmul.f32 %v587, %v591
        %s608 = sld [smem:[#allocation4 + %s45]]
        %v609 = vstv %s608
        %v610 = vadd.f32 %v592, %v609
        %v611 = vadd.f32 %v593, %v609
        %v612 = vadd.f32 %v594, %v609
        %v613 = vadd.f32 %v595, %v609
        %v614 = vadd.f32 %v596, %v609
        %v615 = vadd.f32 %v597, %v609
        %v616 = vadd.f32 %v598, %v609
        %v617 = vadd.f32 %v599, %v609
        %v618 = vadd.f32 %v600, %v609
        %v619 = vadd.f32 %v601, %v609
        %v620 = vadd.f32 %v602, %v609
        %v621 = vadd.f32 %v603, %v609
        %v622 = vadd.f32 %v604, %v609
        %v623 = vadd.f32 %v605, %v609
        %v624 = vadd.f32 %v606, %v609
        %v625 = vadd.f32 %v607, %v609
        %v626 = vpack.c.bf16 %v611, %v610
        %v627 = vpack.c.bf16 %v613, %v612
        %v628 = vpack.c.bf16 %v615, %v614
        %v629 = vpack.c.bf16 %v617, %v616
        %v630 = vpack.c.bf16 %v619, %v618
        %v631 = vpack.c.bf16 %v621, %v620
        %v632 = vpack.c.bf16 %v623, %v622
        %v633 = vpack.c.bf16 %v625, %v624
        %v650 = vunpack.c.l.b16 %v403
        %v651 = vunpack.c.l.b16 %v404
        %v652 = vunpack.c.l.b16 %v405
        %v653 = vunpack.c.l.b16 %v406
        %v654 = vunpack.c.l.b16 %v407
        %v655 = vunpack.c.l.b16 %v408
        %v656 = vunpack.c.l.b16 %v409
        %v657 = vunpack.c.l.b16 %v410
        %v658 = vunpack.c.l.b16 %v411
        %v659 = vunpack.c.l.b16 %v412
        %v660 = vunpack.c.l.b16 %v413
        %v661 = vunpack.c.l.b16 %v414
        %v662 = vunpack.c.l.b16 %v415
        %v663 = vunpack.c.l.b16 %v416
        %v664 = vunpack.c.l.b16 %v417
        %v665 = vunpack.c.l.b16 %v418
        %v666 = vpack.c.b16 %v651, %v650
        %v667 = vpack.c.b16 %v653, %v652
        %v668 = vpack.c.b16 %v655, %v654
        %v669 = vpack.c.b16 %v657, %v656
        %v670 = vpack.c.b16 %v659, %v658
        %v671 = vpack.c.b16 %v661, %v660
        %v672 = vpack.c.b16 %v663, %v662
        %v673 = vpack.c.b16 %v665, %v664
        %682 = vmatprep.subr.bf16.mxu0 0
        %683 = vmatpush1.bf16.msra.mxu0 %v666
        %684 = vmatprep.subr.bf16.mxu0 0
        %685 = vmatpush1.bf16.msra.mxu0 %v667
        %686 = vmatprep.subr.bf16.mxu0 0
        %687 = vmatpush1.bf16.msra.mxu0 %v668
        %688 = vmatprep.subr.bf16.mxu0 0
        %689 = vmatpush1.bf16.msra.mxu0 %v669
        %690 = vmatprep.subr.bf16.mxu0 0
        %691 = vmatpush1.bf16.msra.mxu0 %v670
        %692 = vmatprep.subr.bf16.mxu0 0
        %693 = vmatpush1.bf16.msra.mxu0 %v671
        %694 = vmatprep.subr.bf16.mxu0 0
        %695 = vmatpush1.bf16.msra.mxu0 %v672
        %696 = vmatprep.subr.bf16.mxu0 0
        %697 = vmatpush1.bf16.msra.mxu0 %v673
        %698 = vmatprep.subr.bf16.mxu0 0
        %699 = vmatpush1.bf16.msra.mxu0 0
        %700 = vmatprep.subr.bf16.mxu0 0
        %701 = vmatpush1.bf16.msra.mxu0 0
        %702 = vmatprep.subr.bf16.mxu0 0
        %703 = vmatpush1.bf16.msra.mxu0 0
        %704 = vmatprep.subr.bf16.mxu0 0
        %705 = vmatpush1.bf16.msra.mxu0 0
        %706 = vmatprep.subr.bf16.mxu0 0
        %707 = vmatpush1.bf16.msra.mxu0 0
        %708 = vmatprep.subr.bf16.mxu0 0
        %709 = vmatpush1.bf16.msra.mxu0 0
        %710 = vmatprep.subr.bf16.mxu0 0
        %711 = vmatpush1.bf16.msra.mxu0 0
        %712 = vmatprep.subr.bf16.mxu0 0
        %713 = vmatpush1.bf16.msra.mxu0 0
        %714 = vmatprep.mubr.bf16.mxu0 0
        %715 = vmatmul.mubr.bf16.gmra.mrb[0].mxu0 %v626
        %v716 = vpop.f32.mrb[0].mxu0
        %v717 = vadd.f32 0.0, %v716
        %v718 = vpop.f32.mrb[0].mxu0
        %v719 = vpop.f32.mrb[0].mxu0
        %v720 = vadd.f32 0.0, %v719
        %v721 = vpop.f32.mrb[0].mxu0
        %722 = vmatprep.mubr.bf16.mxu0 0
        %723 = vmatmul.mubr.bf16.gmra.mrb[0].mxu0 %v627
        %v724 = vpop.f32.mrb[0].mxu0
        %v725 = vadd.f32 0.0, %v724
        %v726 = vpop.f32.mrb[0].mxu0
        %v727 = vpop.f32.mrb[0].mxu0
        %v728 = vadd.f32 0.0, %v727
        %v729 = vpop.f32.mrb[0].mxu0
        %730 = vmatprep.mubr.bf16.mxu0 0
        %731 = vmatmul.mubr.bf16.gmra.mrb[0].mxu0 %v628
        %v732 = vpop.f32.mrb[0].mxu0
        %v733 = vadd.f32 0.0, %v732
        %v734 = vpop.f32.mrb[0].mxu0
        %v735 = vpop.f32.mrb[0].mxu0
        %v736 = vadd.f32 0.0, %v735
        %v737 = vpop.f32.mrb[0].mxu0
        %738 = vmatprep.mubr.bf16.mxu0 0
        %739 = vmatmul.mubr.bf16.gmra.mrb[0].mxu0 %v629
        %v740 = vpop.f32.mrb[0].mxu0
        %v741 = vadd.f32 0.0, %v740
        %v742 = vpop.f32.mrb[0].mxu0
        %v743 = vpop.f32.mrb[0].mxu0
        %v744 = vadd.f32 0.0, %v743
        %v745 = vpop.f32.mrb[0].mxu0
        %746 = vmatprep.mubr.bf16.mxu0 0
        %747 = vmatmul.mubr.bf16.gmra.mrb[0].mxu0 %v630
        %v748 = vpop.f32.mrb[0].mxu0
        %v749 = vadd.f32 0.0, %v748
        %v750 = vpop.f32.mrb[0].mxu0
        %v751 = vpop.f32.mrb[0].mxu0
        %v752 = vadd.f32 0.0, %v751
        %v753 = vpop.f32.mrb[0].mxu0
        %754 = vmatprep.mubr.bf16.mxu0 0
        %755 = vmatmul.mubr.bf16.gmra.mrb[0].mxu0 %v631
        %v756 = vpop.f32.mrb[0].mxu0
        %v757 = vadd.f32 0.0, %v756
        %v758 = vpop.f32.mrb[0].mxu0
        %v759 = vpop.f32.mrb[0].mxu0
        %v760 = vadd.f32 0.0, %v759
        %v761 = vpop.f32.mrb[0].mxu0
        %762 = vmatprep.mubr.bf16.mxu0 0
        %763 = vmatmul.mubr.bf16.gmra.mrb[0].mxu0 %v632
        %v764 = vpop.f32.mrb[0].mxu0
        %v765 = vadd.f32 0.0, %v764
        %v766 = vpop.f32.mrb[0].mxu0
        %v767 = vpop.f32.mrb[0].mxu0
        %v768 = vadd.f32 0.0, %v767
        %v769 = vpop.f32.mrb[0].mxu0
        %770 = vmatprep.mubr.bf16.mxu0 0
        %771 = vmatmul.mubr.bf16.gmra.mrb[0].mxu0 %v633
        %v772 = vpop.f32.mrb[0].mxu0
        %v773 = vadd.f32 0.0, %v772
        %v774 = vpop.f32.mrb[0].mxu0
        %v775 = vpop.f32.mrb[0].mxu0
        %v776 = vadd.f32 0.0, %v775
        %v777 = vpop.f32.mrb[0].mxu0
        %778 = vdwg.mxu0
        %v779 = vsub.f32 %v610, %v717
        %v780 = vsub.f32 %v611, %v720
        %v781 = vsub.f32 %v612, %v725
        %v782 = vsub.f32 %v613, %v728
        %v783 = vsub.f32 %v614, %v733
        %v784 = vsub.f32 %v615, %v736
        %v785 = vsub.f32 %v616, %v741
        %v786 = vsub.f32 %v617, %v744
        %v787 = vsub.f32 %v618, %v749
        %v788 = vsub.f32 %v619, %v752
        %v789 = vsub.f32 %v620, %v757
        %v790 = vsub.f32 %v621, %v760
        %v791 = vsub.f32 %v622, %v765
        %v792 = vsub.f32 %v623, %v768
        %v793 = vsub.f32 %v624, %v773
        %v794 = vsub.f32 %v625, %v776
        %v795 = vmul.f32 %v779, %v779
        %v796 = vmul.f32 %v780, %v780
        %v797 = vmul.f32 %v781, %v781
        %v798 = vmul.f32 %v782, %v782
        %v799 = vmul.f32 %v783, %v783
        %v800 = vmul.f32 %v784, %v784
        %v801 = vmul.f32 %v785, %v785
        %v802 = vmul.f32 %v786, %v786
        %v803 = vmul.f32 %v787, %v787
        %v804 = vmul.f32 %v788, %v788
        %v805 = vmul.f32 %v789, %v789
        %v806 = vmul.f32 %v790, %v790
        %v807 = vmul.f32 %v791, %v791
        %v808 = vmul.f32 %v792, %v792
        %v809 = vmul.f32 %v793, %v793
        %v810 = vmul.f32 %v794, %v794
        %v811 = vpack.c.bf16 %v796, %v795
        %v812 = vpack.c.bf16 %v798, %v797
        %v813 = vpack.c.bf16 %v800, %v799
        %v814 = vpack.c.bf16 %v802, %v801
        %v815 = vpack.c.bf16 %v804, %v803
        %v816 = vpack.c.bf16 %v806, %v805
        %v817 = vpack.c.bf16 %v808, %v807
        %v818 = vpack.c.bf16 %v810, %v809
        %819 = vmatprep.subr.bf16.mxu0 0
        %820 = vmatpush1.bf16.msra.mxu0 %v666
        %821 = vmatprep.subr.bf16.mxu0 0
        %822 = vmatpush1.bf16.msra.mxu0 %v667
        %823 = vmatprep.subr.bf16.mxu0 0
        %824 = vmatpush1.bf16.msra.mxu0 %v668
        %825 = vmatprep.subr.bf16.mxu0 0
        %826 = vmatpush1.bf16.msra.mxu0 %v669
        %827 = vmatprep.subr.bf16.mxu0 0
        %828 = vmatpush1.bf16.msra.mxu0 %v670
        %829 = vmatprep.subr.bf16.mxu0 0
        %830 = vmatpush1.bf16.msra.mxu0 %v671
        %831 = vmatprep.subr.bf16.mxu0 0
        %832 = vmatpush1.bf16.msra.mxu0 %v672
        %833 = vmatprep.subr.bf16.mxu0 0
        %834 = vmatpush1.bf16.msra.mxu0 %v673
        %835 = vmatprep.subr.bf16.mxu0 0
        %836 = vmatpush1.bf16.msra.mxu0 0
        %837 = vmatprep.subr.bf16.mxu0 0
        %838 = vmatpush1.bf16.msra.mxu0 0
        %839 = vmatprep.subr.bf16.mxu0 0
        %840 = vmatpush1.bf16.msra.mxu0 0
        %841 = vmatprep.subr.bf16.mxu0 0
        %842 = vmatpush1.bf16.msra.mxu0 0
        %843 = vmatprep.subr.bf16.mxu0 0
        %844 = vmatpush1.bf16.msra.mxu0 0
        %845 = vmatprep.subr.bf16.mxu0 0
        %846 = vmatpush1.bf16.msra.mxu0 0
        %847 = vmatprep.subr.bf16.mxu0 0
        %848 = vmatpush1.bf16.msra.mxu0 0
        %849 = vmatprep.subr.bf16.mxu0 0
        %850 = vmatpush1.bf16.msra.mxu0 0
        %851 = vmatprep.mubr.bf16.mxu0 0
        %852 = vmatmul.mubr.bf16.gmra.mrb[0].mxu0 %v811
        %v853 = vpop.f32.mrb[0].mxu0
        %v854 = vadd.f32 1e-05, %v853
        %v855 = vpop.f32.mrb[0].mxu0
        %v856 = vpop.f32.mrb[0].mxu0
        %v857 = vadd.f32 1e-05, %v856
        %v858 = vpop.f32.mrb[0].mxu0
        %859 = vmatprep.mubr.bf16.mxu0 0
        %860 = vmatmul.mubr.bf16.gmra.mrb[0].mxu0 %v812
        %v861 = vpop.f32.mrb[0].mxu0
        %v862 = vadd.f32 1e-05, %v861
        %v863 = vpop.f32.mrb[0].mxu0
        %v864 = vpop.f32.mrb[0].mxu0
        %v865 = vadd.f32 1e-05, %v864
        %v866 = vpop.f32.mrb[0].mxu0
        %867 = vmatprep.mubr.bf16.mxu0 0
        %868 = vmatmul.mubr.bf16.gmra.mrb[0].mxu0 %v813
        %v869 = vpop.f32.mrb[0].mxu0
        %v870 = vadd.f32 1e-05, %v869
        %v871 = vpop.f32.mrb[0].mxu0
        %v872 = vpop.f32.mrb[0].mxu0
        %v873 = vadd.f32 1e-05, %v872
        %v874 = vpop.f32.mrb[0].mxu0
        %875 = vmatprep.mubr.bf16.mxu0 0
        %876 = vmatmul.mubr.bf16.gmra.mrb[0].mxu0 %v814
        %v877 = vpop.f32.mrb[0].mxu0
        %v878 = vadd.f32 1e-05, %v877
        %v879 = vpop.f32.mrb[0].mxu0
        %v880 = vpop.f32.mrb[0].mxu0
        %v881 = vadd.f32 1e-05, %v880
        %v882 = vpop.f32.mrb[0].mxu0
        %883 = vmatprep.mubr.bf16.mxu0 0
        %884 = vmatmul.mubr.bf16.gmra.mrb[0].mxu0 %v815
        %v885 = vpop.f32.mrb[0].mxu0
        %v886 = vadd.f32 1e-05, %v885
        %v887 = vpop.f32.mrb[0].mxu0
        %v888 = vpop.f32.mrb[0].mxu0
        %v889 = vadd.f32 1e-05, %v888
        %v890 = vpop.f32.mrb[0].mxu0
        %891 = vmatprep.mubr.bf16.mxu0 0
        %892 = vmatmul.mubr.bf16.gmra.mrb[0].mxu0 %v816
        %v893 = vpop.f32.mrb[0].mxu0
        %v894 = vadd.f32 1e-05, %v893
        %v895 = vpop.f32.mrb[0].mxu0
        %v896 = vpop.f32.mrb[0].mxu0
        %v897 = vadd.f32 1e-05, %v896
        %v898 = vpop.f32.mrb[0].mxu0
        %899 = vmatprep.mubr.bf16.mxu0 0
        %900 = vmatmul.mubr.bf16.gmra.mrb[0].mxu0 %v817
        %v901 = vpop.f32.mrb[0].mxu0
        %v902 = vadd.f32 1e-05, %v901
        %v903 = vpop.f32.mrb[0].mxu0
        %v904 = vpop.f32.mrb[0].mxu0
        %v905 = vadd.f32 1e-05, %v904
        %v906 = vpop.f32.mrb[0].mxu0
        %907 = vmatprep.mubr.bf16.mxu0 0
        %908 = vmatmul.mubr.bf16.gmra.mrb[0].mxu0 %v818
        %v909 = vpop.f32.mrb[0].mxu0
        %v910 = vadd.f32 1e-05, %v909
        %v911 = vpop.f32.mrb[0].mxu0
        %v912 = vpop.f32.mrb[0].mxu0
        %v913 = vadd.f32 1e-05, %v912
        %v914 = vpop.f32.mrb[0].mxu0
        %915 = vdwg.mxu0
        %v916 = vrsqrt.pop %v854
        %v917 = vrsqrt.pop %v857
        %v918 = vrsqrt.pop %v862
        %v919 = vrsqrt.pop %v865
        %v920 = vrsqrt.pop %v870
        %v921 = vrsqrt.pop %v873
        %v922 = vrsqrt.pop %v878
        %v923 = vrsqrt.pop %v881
        %v924 = vrsqrt.pop %v886
        %v925 = vrsqrt.pop %v889
        %v926 = vrsqrt.pop %v894
        %v927 = vrsqrt.pop %v897
        %v928 = vrsqrt.pop %v902
        %v929 = vrsqrt.pop %v905
        %v930 = vrsqrt.pop %v910
        %v931 = vrsqrt.pop %v913
        %v932 = vmul.f32 %v779, %v916
        %v933 = vmul.f32 %v780, %v917
        %v934 = vmul.f32 %v781, %v918
        %v935 = vmul.f32 %v782, %v919
        %v936 = vmul.f32 %v783, %v920
        %v937 = vmul.f32 %v784, %v921
        %v938 = vmul.f32 %v785, %v922
        %v939 = vmul.f32 %v786, %v923
        %v940 = vmul.f32 %v787, %v924
        %v941 = vmul.f32 %v788, %v925
        %v942 = vmul.f32 %v789, %v926
        %v943 = vmul.f32 %v790, %v927
        %v944 = vmul.f32 %v791, %v928
        %v945 = vmul.f32 %v792, %v929
        %v946 = vmul.f32 %v793, %v930
        %v947 = vmul.f32 %v794, %v931
        %v948 = vld [vmem:[%s6] sm:$0x1]
        %v950 = vlaneseq
        %v951 = vshrl.u32 %v950, 7
        %v952 = vsub.s32 0, %v951
        %v953 = vrot.slane %v948, %v952
        %v955 = vmul.f32 %v932, %v953
        %v956 = vmul.f32 %v933, %v953
        %v957 = vmul.f32 %v934, %v953
        %v958 = vmul.f32 %v935, %v953
        %v959 = vmul.f32 %v936, %v953
        %v960 = vmul.f32 %v937, %v953
        %v961 = vmul.f32 %v938, %v953
        %v962 = vmul.f32 %v939, %v953
        %v963 = vmul.f32 %v940, %v953
        %v964 = vmul.f32 %v941, %v953
        %v965 = vmul.f32 %v942, %v953
        %v966 = vmul.f32 %v943, %v953
        %v967 = vmul.f32 %v944, %v953
        %v968 = vmul.f32 %v945, %v953
        %v969 = vmul.f32 %v946, %v953
        %v970 = vmul.f32 %v947, %v953
        %v971 = vld [vmem:[%s7] sm:$0x1]
        %v973 = vlaneseq
        %v974 = vshrl.u32 %v973, 7
        %v975 = vsub.s32 0, %v974
        %v976 = vrot.slane %v971, %v975
        %v978 = vadd.f32 %v955, %v976
        %v979 = vadd.f32 %v956, %v976
        %v980 = vadd.f32 %v957, %v976
        %v981 = vadd.f32 %v958, %v976
        %v982 = vadd.f32 %v959, %v976
        %v983 = vadd.f32 %v960, %v976
        %v984 = vadd.f32 %v961, %v976
        %v985 = vadd.f32 %v962, %v976
        %v986 = vadd.f32 %v963, %v976
        %v987 = vadd.f32 %v964, %v976
        %v988 = vadd.f32 %v965, %v976
        %v989 = vadd.f32 %v966, %v976
        %v990 = vadd.f32 %v967, %v976
        %v991 = vadd.f32 %v968, %v976
        %v992 = vadd.f32 %v969, %v976
        %v993 = vadd.f32 %v970, %v976
        %v994 = vmax.f32 %v978, 0.0
        %v995 = vmax.f32 %v979, 0.0
        %v996 = vmax.f32 %v980, 0.0
        %v997 = vmax.f32 %v981, 0.0
        %v998 = vmax.f32 %v982, 0.0
        %v999 = vmax.f32 %v983, 0.0
        %v1000 = vmax.f32 %v984, 0.0
        %v1001 = vmax.f32 %v985, 0.0
        %v1002 = vmax.f32 %v986, 0.0
        %v1003 = vmax.f32 %v987, 0.0
        %v1004 = vmax.f32 %v988, 0.0
        %v1005 = vmax.f32 %v989, 0.0
        %v1006 = vmax.f32 %v990, 0.0
        %v1007 = vmax.f32 %v991, 0.0
        %v1008 = vmax.f32 %v992, 0.0
        %v1009 = vmax.f32 %v993, 0.0
        %v1010 = vsel %vm420, 1, 0
        %v1011 = vlaneseq
        %v1012 = vshrl.u32 %v1011, 7
        %v1013 = vsub.s32 0, %v1012
        %v1014 = vrot.slane %v1010, %v1013
        %vm1015 = vcmp.eq.s32.totalorder %v1014, 1
        %v1016 = vsel %vm1015, %v994, 1.0
        %v1017 = vsel %vm1015, %v995, 1.0
        %v1018 = vsel %vm1015, %v996, 1.0
        %v1019 = vsel %vm1015, %v997, 1.0
        %v1020 = vsel %vm1015, %v998, 1.0
        %v1021 = vsel %vm1015, %v999, 1.0
        %v1022 = vsel %vm1015, %v1000, 1.0
        %v1023 = vsel %vm1015, %v1001, 1.0
        %v1024 = vsel %vm1015, %v1002, 1.0
        %v1025 = vsel %vm1015, %v1003, 1.0
        %v1026 = vsel %vm1015, %v1004, 1.0
        %v1027 = vsel %vm1015, %v1005, 1.0
        %v1028 = vsel %vm1015, %v1006, 1.0
        %v1029 = vsel %vm1015, %v1007, 1.0
        %v1030 = vsel %vm1015, %v1008, 1.0
        %v1031 = vsel %vm1015, %v1009, 1.0
        %v1032 = vmul.f32 %v610, %v1016
        %v1033 = vmul.f32 %v611, %v1017
        %v1034 = vmul.f32 %v612, %v1018
        %v1035 = vmul.f32 %v613, %v1019
        %v1036 = vmul.f32 %v614, %v1020
        %v1037 = vmul.f32 %v615, %v1021
        %v1038 = vmul.f32 %v616, %v1022
        %v1039 = vmul.f32 %v617, %v1023
        %v1040 = vmul.f32 %v618, %v1024
        %v1041 = vmul.f32 %v619, %v1025
        %v1042 = vmul.f32 %v620, %v1026
        %v1043 = vmul.f32 %v621, %v1027
        %v1044 = vmul.f32 %v622, %v1028
        %v1045 = vmul.f32 %v623, %v1029
        %v1046 = vmul.f32 %v624, %v1030
        %v1047 = vmul.f32 %v625, %v1031
        %v1048 = vld [vmem:[%s5] sm:$0x1]
        %v1050 = vlaneseq
        %v1051 = vshrl.u32 %v1050, 7
        %v1052 = vsub.s32 0, %v1051
        %v1053 = vrot.slane %v1048, %v1052
        %v1055 = vadd.f32 %v1032, %v1053
        %v1056 = vadd.f32 %v1033, %v1053
        %v1057 = vadd.f32 %v1034, %v1053
        %v1058 = vadd.f32 %v1035, %v1053
        %v1059 = vadd.f32 %v1036, %v1053
        %v1060 = vadd.f32 %v1037, %v1053
        %v1061 = vadd.f32 %v1038, %v1053
        %v1062 = vadd.f32 %v1039, %v1053
        %v1063 = vadd.f32 %v1040, %v1053
        %v1064 = vadd.f32 %v1041, %v1053
        %v1065 = vadd.f32 %v1042, %v1053
        %v1066 = vadd.f32 %v1043, %v1053
        %v1067 = vadd.f32 %v1044, %v1053
        %v1068 = vadd.f32 %v1045, %v1053
        %v1069 = vadd.f32 %v1046, %v1053
        %v1070 = vadd.f32 %v1047, %v1053
        %v1071 = vmul.f32 %v387, %v1055
        %v1072 = vmul.f32 %v388, %v1056
        %v1073 = vmul.f32 %v389, %v1057
        %v1074 = vmul.f32 %v390, %v1058
        %v1075 = vmul.f32 %v391, %v1059
        %v1076 = vmul.f32 %v392, %v1060
        %v1077 = vmul.f32 %v393, %v1061
        %v1078 = vmul.f32 %v394, %v1062
        %v1079 = vmul.f32 %v395, %v1063
        %v1080 = vmul.f32 %v396, %v1064
        %v1081 = vmul.f32 %v397, %v1065
        %v1082 = vmul.f32 %v398, %v1066
        %v1083 = vmul.f32 %v399, %v1067
        %v1084 = vmul.f32 %v400, %v1068
        %v1085 = vmul.f32 %v401, %v1069
        %v1086 = vmul.f32 %v402, %v1070
        %v1087 = vadd.f32 %v1071, %v387
        %v1088 = vadd.f32 %v1072, %v388
        %v1089 = vadd.f32 %v1073, %v389
        %v1090 = vadd.f32 %v1074, %v390
        %v1091 = vadd.f32 %v1075, %v391
        %v1092 = vadd.f32 %v1076, %v392
        %v1093 = vadd.f32 %v1077, %v393
        %v1094 = vadd.f32 %v1078, %v394
        %v1095 = vadd.f32 %v1079, %v395
        %v1096 = vadd.f32 %v1080, %v396
        %v1097 = vadd.f32 %v1081, %v397
        %v1098 = vadd.f32 %v1082, %v398
        %v1099 = vadd.f32 %v1083, %v399
        %v1100 = vadd.f32 %v1084, %v400
        %v1101 = vadd.f32 %v1085, %v401
        %v1102 = vadd.f32 %v1086, %v402
        %v1103 = vpack.c.bf16 %v1088, %v1087
        %v1104 = vpack.c.bf16 %v1090, %v1089
        %v1105 = vpack.c.bf16 %v1092, %v1091
        %v1106 = vpack.c.bf16 %v1094, %v1093
        %v1107 = vpack.c.bf16 %v1096, %v1095
        %v1108 = vpack.c.bf16 %v1098, %v1097
        %v1109 = vpack.c.bf16 %v1100, %v1099
        %v1110 = vpack.c.bf16 %v1102, %v1101
        %s1111 = scalar_lea.vmem [#allocation9], 64
        %v1112 = vld [vmem:[%s1111] sm:$0xf]
        %v1113 = vld [vmem:[%s1111 + $0x4] sm:$0xf]
        %v1114 = vld [vmem:[%s1111 + $0x8] sm:$0xf]
        %v1115 = vld [vmem:[%s1111 + $0xc] sm:$0xf]
        %v1116 = vld [vmem:[%s1111 + $0x10] sm:$0xf]
        %v1117 = vld [vmem:[%s1111 + $0x14] sm:$0xf]
        %v1118 = vld [vmem:[%s1111 + $0x18] sm:$0xf]
        %v1119 = vld [vmem:[%s1111 + $0x1c] sm:$0xf]
        %v1120 = vld [vmem:[%s1111 + $0x20] sm:$0xf]
        %v1121 = vld [vmem:[%s1111 + $0x24] sm:$0xf]
        %v1122 = vld [vmem:[%s1111 + $0x28] sm:$0xf]
        %v1123 = vld [vmem:[%s1111 + $0x2c] sm:$0xf]
        %v1124 = vld [vmem:[%s1111 + $0x30] sm:$0xf]
        %v1125 = vld [vmem:[%s1111 + $0x34] sm:$0xf]
        %v1126 = vld [vmem:[%s1111 + $0x38] sm:$0xf]
        %v1127 = vld [vmem:[%s1111 + $0x3c] sm:$0xf]
        %v1144 = vunpack.c.l.b16 %v1112
        %v1145 = vunpack.c.l.b16 %v1113
        %v1146 = vunpack.c.l.b16 %v1114
        %v1147 = vunpack.c.l.b16 %v1115
        %v1148 = vunpack.c.l.b16 %v1116
        %v1149 = vunpack.c.l.b16 %v1117
        %v1150 = vunpack.c.l.b16 %v1118
        %v1151 = vunpack.c.l.b16 %v1119
        %v1152 = vunpack.c.l.b16 %v1120
        %v1153 = vunpack.c.l.b16 %v1121
        %v1154 = vunpack.c.l.b16 %v1122
        %v1155 = vunpack.c.l.b16 %v1123
        %v1156 = vunpack.c.l.b16 %v1124
        %v1157 = vunpack.c.l.b16 %v1125
        %v1158 = vunpack.c.l.b16 %v1126
        %v1159 = vunpack.c.l.b16 %v1127
        %v1160 = vpack.c.b16 %v1145, %v1144
        %v1161 = vpack.c.b16 %v1147, %v1146
        %v1162 = vpack.c.b16 %v1149, %v1148
        %v1163 = vpack.c.b16 %v1151, %v1150
        %v1164 = vpack.c.b16 %v1153, %v1152
        %v1165 = vpack.c.b16 %v1155, %v1154
        %v1166 = vpack.c.b16 %v1157, %v1156
        %v1167 = vpack.c.b16 %v1159, %v1158
        %1176 = vmatprep.subr.bf16.mxu0 0
        %1177 = vmatpush1.bf16.msra.mxu0 %v1160
        %1178 = vmatprep.subr.bf16.mxu0 0
        %1179 = vmatpush1.bf16.msra.mxu0 %v1161
        %1180 = vmatprep.subr.bf16.mxu0 0
        %1181 = vmatpush1.bf16.msra.mxu0 %v1162
        %1182 = vmatprep.subr.bf16.mxu0 0
        %1183 = vmatpush1.bf16.msra.mxu0 %v1163
        %1184 = vmatprep.subr.bf16.mxu0 0
        %1185 = vmatpush1.bf16.msra.mxu0 %v1164
        %1186 = vmatprep.subr.bf16.mxu0 0
        %1187 = vmatpush1.bf16.msra.mxu0 %v1165
        %1188 = vmatprep.subr.bf16.mxu0 0
        %1189 = vmatpush1.bf16.msra.mxu0 %v1166
        %1190 = vmatprep.subr.bf16.mxu0 0
        %1191 = vmatpush1.bf16.msra.mxu0 %v1167
        %1192 = vmatprep.subr.bf16.mxu0 0
        %1193 = vmatpush1.bf16.msra.mxu0 0
        %1194 = vmatprep.subr.bf16.mxu0 0
        %1195 = vmatpush1.bf16.msra.mxu0 0
        %1196 = vmatprep.subr.bf16.mxu0 0
        %1197 = vmatpush1.bf16.msra.mxu0 0
        %1198 = vmatprep.subr.bf16.mxu0 0
        %1199 = vmatpush1.bf16.msra.mxu0 0
        %1200 = vmatprep.subr.bf16.mxu0 0
        %1201 = vmatpush1.bf16.msra.mxu0 0
        %1202 = vmatprep.subr.bf16.mxu0 0
        %1203 = vmatpush1.bf16.msra.mxu0 0
        %1204 = vmatprep.subr.bf16.mxu0 0
        %1205 = vmatpush1.bf16.msra.mxu0 0
        %1206 = vmatprep.subr.bf16.mxu0 0
        %1207 = vmatpush1.bf16.msra.mxu0 0
        %1208 = vmatprep.mubr.bf16.mxu0 0
        %1209 = vmatmul.mubr.bf16.gmra.mrb[0].mxu0 %v1103
        %v1210 = vpop.f32.mrb[0].mxu0
        %v1211 = vadd.f32 0.0, %v1210
        %v1212 = vpop.f32.mrb[0].mxu0
        %v1213 = vpop.f32.mrb[0].mxu0
        %v1214 = vadd.f32 0.0, %v1213
        %v1215 = vpop.f32.mrb[0].mxu0
        %1216 = vmatprep.mubr.bf16.mxu0 0
        %1217 = vmatmul.mubr.bf16.gmra.mrb[0].mxu0 %v1104
        %v1218 = vpop.f32.mrb[0].mxu0
        %v1219 = vadd.f32 0.0, %v1218
        %v1220 = vpop.f32.mrb[0].mxu0
        %v1221 = vpop.f32.mrb[0].mxu0
        %v1222 = vadd.f32 0.0, %v1221
        %v1223 = vpop.f32.mrb[0].mxu0
        %1224 = vmatprep.mubr.bf16.mxu0 0
        %1225 = vmatmul.mubr.bf16.gmra.mrb[0].mxu0 %v1105
        %v1226 = vpop.f32.mrb[0].mxu0
        %v1227 = vadd.f32 0.0, %v1226
        %v1228 = vpop.f32.mrb[0].mxu0
        %v1229 = vpop.f32.mrb[0].mxu0
        %v1230 = vadd.f32 0.0, %v1229
        %v1231 = vpop.f32.mrb[0].mxu0
        %1232 = vmatprep.mubr.bf16.mxu0 0
        %1233 = vmatmul.mubr.bf16.gmra.mrb[0].mxu0 %v1106
        %v1234 = vpop.f32.mrb[0].mxu0
        %v1235 = vadd.f32 0.0, %v1234
        %v1236 = vpop.f32.mrb[0].mxu0
        %v1237 = vpop.f32.mrb[0].mxu0
        %v1238 = vadd.f32 0.0, %v1237
        %v1239 = vpop.f32.mrb[0].mxu0
        %1240 = vmatprep.mubr.bf16.mxu0 0
        %1241 = vmatmul.mubr.bf16.gmra.mrb[0].mxu0 %v1107
        %v1242 = vpop.f32.mrb[0].mxu0
        %v1243 = vadd.f32 0.0, %v1242
        %v1244 = vpop.f32.mrb[0].mxu0
        %v1245 = vpop.f32.mrb[0].mxu0
        %v1246 = vadd.f32 0.0, %v1245
        %v1247 = vpop.f32.mrb[0].mxu0
        %1248 = vmatprep.mubr.bf16.mxu0 0
        %1249 = vmatmul.mubr.bf16.gmra.mrb[0].mxu0 %v1108
        %v1250 = vpop.f32.mrb[0].mxu0
        %v1251 = vadd.f32 0.0, %v1250
        %v1252 = vpop.f32.mrb[0].mxu0
        %v1253 = vpop.f32.mrb[0].mxu0
        %v1254 = vadd.f32 0.0, %v1253
        %v1255 = vpop.f32.mrb[0].mxu0
        %1256 = vmatprep.mubr.bf16.mxu0 0
        %1257 = vmatmul.mubr.bf16.gmra.mrb[0].mxu0 %v1109
        %v1258 = vpop.f32.mrb[0].mxu0
        %v1259 = vadd.f32 0.0, %v1258
        %v1260 = vpop.f32.mrb[0].mxu0
        %v1261 = vpop.f32.mrb[0].mxu0
        %v1262 = vadd.f32 0.0, %v1261
        %v1263 = vpop.f32.mrb[0].mxu0
        %1264 = vmatprep.mubr.bf16.mxu0 0
        %1265 = vmatmul.mubr.bf16.gmra.mrb[0].mxu0 %v1110
        %v1266 = vpop.f32.mrb[0].mxu0
        %v1267 = vadd.f32 0.0, %v1266
        %v1268 = vpop.f32.mrb[0].mxu0
        %v1269 = vpop.f32.mrb[0].mxu0
        %v1270 = vadd.f32 0.0, %v1269
        %v1271 = vpop.f32.mrb[0].mxu0
        %1272 = vdwg.mxu0
        %s1273 = sshra.s32 %s45, 7
        %s1274 = sand.u32 %s45, 127
        %s1275 = sadd.s32 %s1273, 1
        %s1276 = smul.u32 %s1275, 128
        %s1277 = sshra.s32 %s45, 7
        %s1278 = sand.u32 %s45, 127
        %s1279 = sadd.s32 %s1276, %s1278
        %s1280 = sld [smem:[#allocation3 + %s1279]]
        %v1281 = vstv %s1280
        %v1282 = vmul.f32 %v1211, %v1281
        %v1283 = vmul.f32 %v1214, %v1281
        %v1284 = vmul.f32 %v1219, %v1281
        %v1285 = vmul.f32 %v1222, %v1281
        %v1286 = vmul.f32 %v1227, %v1281
        %v1287 = vmul.f32 %v1230, %v1281
        %v1288 = vmul.f32 %v1235, %v1281
        %v1289 = vmul.f32 %v1238, %v1281
        %v1290 = vmul.f32 %v1243, %v1281
        %v1291 = vmul.f32 %v1246, %v1281
        %v1292 = vmul.f32 %v1251, %v1281
        %v1293 = vmul.f32 %v1254, %v1281
        %v1294 = vmul.f32 %v1259, %v1281
        %v1295 = vmul.f32 %v1262, %v1281
        %v1296 = vmul.f32 %v1267, %v1281
        %v1297 = vmul.f32 %v1270, %v1281
        %s1298 = sld [smem:[#allocation4 + %s1279]]
        %v1299 = vstv %s1298
        %v1300 = vadd.f32 %v1282, %v1299
        %v1301 = vadd.f32 %v1283, %v1299
        %v1302 = vadd.f32 %v1284, %v1299
        %v1303 = vadd.f32 %v1285, %v1299
        %v1304 = vadd.f32 %v1286, %v1299
        %v1305 = vadd.f32 %v1287, %v1299
        %v1306 = vadd.f32 %v1288, %v1299
        %v1307 = vadd.f32 %v1289, %v1299
        %v1308 = vadd.f32 %v1290, %v1299
        %v1309 = vadd.f32 %v1291, %v1299
        %v1310 = vadd.f32 %v1292, %v1299
        %v1311 = vadd.f32 %v1293, %v1299
        %v1312 = vadd.f32 %v1294, %v1299
        %v1313 = vadd.f32 %v1295, %v1299
        %v1314 = vadd.f32 %v1296, %v1299
        %v1315 = vadd.f32 %v1297, %v1299
        %v1316 = vpack.c.bf16 %v1301, %v1300
        %v1317 = vpack.c.bf16 %v1303, %v1302
        %v1318 = vpack.c.bf16 %v1305, %v1304
        %v1319 = vpack.c.bf16 %v1307, %v1306
        %v1320 = vpack.c.bf16 %v1309, %v1308
        %v1321 = vpack.c.bf16 %v1311, %v1310
        %v1322 = vpack.c.bf16 %v1313, %v1312
        %v1323 = vpack.c.bf16 %v1315, %v1314
        %1324 = vmatprep.subr.bf16.mxu0 0
        %1325 = vmatpush1.bf16.msra.mxu0 %v666
        %1326 = vmatprep.subr.bf16.mxu0 0
        %1327 = vmatpush1.bf16.msra.mxu0 %v667
        %1328 = vmatprep.subr.bf16.mxu0 0
        %1329 = vmatpush1.bf16.msra.mxu0 %v668
        %1330 = vmatprep.subr.bf16.mxu0 0
        %1331 = vmatpush1.bf16.msra.mxu0 %v669
        %1332 = vmatprep.subr.bf16.mxu0 0
        %1333 = vmatpush1.bf16.msra.mxu0 %v670
        %1334 = vmatprep.subr.bf16.mxu0 0
        %1335 = vmatpush1.bf16.msra.mxu0 %v671
        %1336 = vmatprep.subr.bf16.mxu0 0
        %1337 = vmatpush1.bf16.msra.mxu0 %v672
        %1338 = vmatprep.subr.bf16.mxu0 0
        %1339 = vmatpush1.bf16.msra.mxu0 %v673
        %1340 = vmatprep.subr.bf16.mxu0 0
        %1341 = vmatpush1.bf16.msra.mxu0 0
        %1342 = vmatprep.subr.bf16.mxu0 0
        %1343 = vmatpush1.bf16.msra.mxu0 0
        %1344 = vmatprep.subr.bf16.mxu0 0
        %1345 = vmatpush1.bf16.msra.mxu0 0
        %1346 = vmatprep.subr.bf16.mxu0 0
        %1347 = vmatpush1.bf16.msra.mxu0 0
        %1348 = vmatprep.subr.bf16.mxu0 0
        %1349 = vmatpush1.bf16.msra.mxu0 0
        %1350 = vmatprep.subr.bf16.mxu0 0
        %1351 = vmatpush1.bf16.msra.mxu0 0
        %1352 = vmatprep.subr.bf16.mxu0 0
        %1353 = vmatpush1.bf16.msra.mxu0 0
        %1354 = vmatprep.subr.bf16.mxu0 0
        %1355 = vmatpush1.bf16.msra.mxu0 0
        %1356 = vmatprep.mubr.bf16.mxu0 0
        %1357 = vmatmul.mubr.bf16.gmra.mrb[0].mxu0 %v1316
        %v1358 = vpop.f32.mrb[0].mxu0
        %v1359 = vadd.f32 0.0, %v1358
        %v1360 = vpop.f32.mrb[0].mxu0
        %v1361 = vpop.f32.mrb[0].mxu0
        %v1362 = vadd.f32 0.0, %v1361
        %v1363 = vpop.f32.mrb[0].mxu0
        %1364 = vmatprep.mubr.bf16.mxu0 0
        %1365 = vmatmul.mubr.bf16.gmra.mrb[0].mxu0 %v1317
        %v1366 = vpop.f32.mrb[0].mxu0
        %v1367 = vadd.f32 0.0, %v1366
        %v1368 = vpop.f32.mrb[0].mxu0
        %v1369 = vpop.f32.mrb[0].mxu0
        %v1370 = vadd.f32 0.0, %v1369
        %v1371 = vpop.f32.mrb[0].mxu0
        %1372 = vmatprep.mubr.bf16.mxu0 0
        %1373 = vmatmul.mubr.bf16.gmra.mrb[0].mxu0 %v1318
        %v1374 = vpop.f32.mrb[0].mxu0
        %v1375 = vadd.f32 0.0, %v1374
        %v1376 = vpop.f32.mrb[0].mxu0
        %v1377 = vpop.f32.mrb[0].mxu0
        %v1378 = vadd.f32 0.0, %v1377
        %v1379 = vpop.f32.mrb[0].mxu0
        %1380 = vmatprep.mubr.bf16.mxu0 0
        %1381 = vmatmul.mubr.bf16.gmra.mrb[0].mxu0 %v1319
        %v1382 = vpop.f32.mrb[0].mxu0
        %v1383 = vadd.f32 0.0, %v1382
        %v1384 = vpop.f32.mrb[0].mxu0
        %v1385 = vpop.f32.mrb[0].mxu0
        %v1386 = vadd.f32 0.0, %v1385
        %v1387 = vpop.f32.mrb[0].mxu0
        %1388 = vmatprep.mubr.bf16.mxu0 0
        %1389 = vmatmul.mubr.bf16.gmra.mrb[0].mxu0 %v1320
        %v1390 = vpop.f32.mrb[0].mxu0
        %v1391 = vadd.f32 0.0, %v1390
        %v1392 = vpop.f32.mrb[0].mxu0
        %v1393 = vpop.f32.mrb[0].mxu0
        %v1394 = vadd.f32 0.0, %v1393
        %v1395 = vpop.f32.mrb[0].mxu0
        %1396 = vmatprep.mubr.bf16.mxu0 0
        %1397 = vmatmul.mubr.bf16.gmra.mrb[0].mxu0 %v1321
        %v1398 = vpop.f32.mrb[0].mxu0
        %v1399 = vadd.f32 0.0, %v1398
        %v1400 = vpop.f32.mrb[0].mxu0
        %v1401 = vpop.f32.mrb[0].mxu0
        %v1402 = vadd.f32 0.0, %v1401
        %v1403 = vpop.f32.mrb[0].mxu0
        %1404 = vmatprep.mubr.bf16.mxu0 0
        %1405 = vmatmul.mubr.bf16.gmra.mrb[0].mxu0 %v1322
        %v1406 = vpop.f32.mrb[0].mxu0
        %v1407 = vadd.f32 0.0, %v1406
        %v1408 = vpop.f32.mrb[0].mxu0
        %v1409 = vpop.f32.mrb[0].mxu0
        %v1410 = vadd.f32 0.0, %v1409
        %v1411 = vpop.f32.mrb[0].mxu0
        %1412 = vmatprep.mubr.bf16.mxu0 0
        %1413 = vmatmul.mubr.bf16.gmra.mrb[0].mxu0 %v1323
        %v1414 = vpop.f32.mrb[0].mxu0
        %v1415 = vadd.f32 0.0, %v1414
        %v1416 = vpop.f32.mrb[0].mxu0
        %v1417 = vpop.f32.mrb[0].mxu0
        %v1418 = vadd.f32 0.0, %v1417
        %v1419 = vpop.f32.mrb[0].mxu0
        %1420 = vdwg.mxu0
        %v1421 = vsub.f32 %v1300, %v1359
        %v1422 = vsub.f32 %v1301, %v1362
        %v1423 = vsub.f32 %v1302, %v1367
        %v1424 = vsub.f32 %v1303, %v1370
        %v1425 = vsub.f32 %v1304, %v1375
        %v1426 = vsub.f32 %v1305, %v1378
        %v1427 = vsub.f32 %v1306, %v1383
        %v1428 = vsub.f32 %v1307, %v1386
        %v1429 = vsub.f32 %v1308, %v1391
        %v1430 = vsub.f32 %v1309, %v1394
        %v1431 = vsub.f32 %v1310, %v1399
        %v1432 = vsub.f32 %v1311, %v1402
        %v1433 = vsub.f32 %v1312, %v1407
        %v1434 = vsub.f32 %v1313, %v1410
        %v1435 = vsub.f32 %v1314, %v1415
        %v1436 = vsub.f32 %v1315, %v1418
        %v1437 = vmul.f32 %v1421, %v1421
        %v1438 = vmul.f32 %v1422, %v1422
        %v1439 = vmul.f32 %v1423, %v1423
        %v1440 = vmul.f32 %v1424, %v1424
        %v1441 = vmul.f32 %v1425, %v1425
        %v1442 = vmul.f32 %v1426, %v1426
        %v1443 = vmul.f32 %v1427, %v1427
        %v1444 = vmul.f32 %v1428, %v1428
        %v1445 = vmul.f32 %v1429, %v1429
        %v1446 = vmul.f32 %v1430, %v1430
        %v1447 = vmul.f32 %v1431, %v1431
        %v1448 = vmul.f32 %v1432, %v1432
        %v1449 = vmul.f32 %v1433, %v1433
        %v1450 = vmul.f32 %v1434, %v1434
        %v1451 = vmul.f32 %v1435, %v1435
        %v1452 = vmul.f32 %v1436, %v1436
        %v1453 = vpack.c.bf16 %v1438, %v1437
        %v1454 = vpack.c.bf16 %v1440, %v1439
        %v1455 = vpack.c.bf16 %v1442, %v1441
        %v1456 = vpack.c.bf16 %v1444, %v1443
        %v1457 = vpack.c.bf16 %v1446, %v1445
        %v1458 = vpack.c.bf16 %v1448, %v1447
        %v1459 = vpack.c.bf16 %v1450, %v1449
        %v1460 = vpack.c.bf16 %v1452, %v1451
        %1461 = vmatprep.subr.bf16.mxu0 0
        %1462 = vmatpush1.bf16.msra.mxu0 %v666
        %1463 = vmatprep.subr.bf16.mxu0 0
        %1464 = vmatpush1.bf16.msra.mxu0 %v667
        %1465 = vmatprep.subr.bf16.mxu0 0
        %1466 = vmatpush1.bf16.msra.mxu0 %v668
        %1467 = vmatprep.subr.bf16.mxu0 0
        %1468 = vmatpush1.bf16.msra.mxu0 %v669
        %1469 = vmatprep.subr.bf16.mxu0 0
        %1470 = vmatpush1.bf16.msra.mxu0 %v670
        %1471 = vmatprep.subr.bf16.mxu0 0
        %1472 = vmatpush1.bf16.msra.mxu0 %v671
        %1473 = vmatprep.subr.bf16.mxu0 0
        %1474 = vmatpush1.bf16.msra.mxu0 %v672
        %1475 = vmatprep.subr.bf16.mxu0 0
        %1476 = vmatpush1.bf16.msra.mxu0 %v673
        %1477 = vmatprep.subr.bf16.mxu0 0
        %1478 = vmatpush1.bf16.msra.mxu0 0
        %1479 = vmatprep.subr.bf16.mxu0 0
        %1480 = vmatpush1.bf16.msra.mxu0 0
        %1481 = vmatprep.subr.bf16.mxu0 0
        %1482 = vmatpush1.bf16.msra.mxu0 0
        %1483 = vmatprep.subr.bf16.mxu0 0
        %1484 = vmatpush1.bf16.msra.mxu0 0
        %1485 = vmatprep.subr.bf16.mxu0 0
        %1486 = vmatpush1.bf16.msra.mxu0 0
        %1487 = vmatprep.subr.bf16.mxu0 0
        %1488 = vmatpush1.bf16.msra.mxu0 0
        %1489 = vmatprep.subr.bf16.mxu0 0
        %1490 = vmatpush1.bf16.msra.mxu0 0
        %1491 = vmatprep.subr.bf16.mxu0 0
        %1492 = vmatpush1.bf16.msra.mxu0 0
        %1493 = vmatprep.mubr.bf16.mxu0 0
        %1494 = vmatmul.mubr.bf16.gmra.mrb[0].mxu0 %v1453
        %v1495 = vpop.f32.mrb[0].mxu0
        %v1496 = vadd.f32 1e-05, %v1495
        %v1497 = vpop.f32.mrb[0].mxu0
        %v1498 = vpop.f32.mrb[0].mxu0
        %v1499 = vadd.f32 1e-05, %v1498
        %v1500 = vpop.f32.mrb[0].mxu0
        %1501 = vmatprep.mubr.bf16.mxu0 0
        %1502 = vmatmul.mubr.bf16.gmra.mrb[0].mxu0 %v1454
        %v1503 = vpop.f32.mrb[0].mxu0
        %v1504 = vadd.f32 1e-05, %v1503
        %v1505 = vpop.f32.mrb[0].mxu0
        %v1506 = vpop.f32.mrb[0].mxu0
        %v1507 = vadd.f32 1e-05, %v1506
        %v1508 = vpop.f32.mrb[0].mxu0
        %1509 = vmatprep.mubr.bf16.mxu0 0
        %1510 = vmatmul.mubr.bf16.gmra.mrb[0].mxu0 %v1455
        %v1511 = vpop.f32.mrb[0].mxu0
        %v1512 = vadd.f32 1e-05, %v1511
        %v1513 = vpop.f32.mrb[0].mxu0
        %v1514 = vpop.f32.mrb[0].mxu0
        %v1515 = vadd.f32 1e-05, %v1514
        %v1516 = vpop.f32.mrb[0].mxu0
        %1517 = vmatprep.mubr.bf16.mxu0 0
        %1518 = vmatmul.mubr.bf16.gmra.mrb[0].mxu0 %v1456
        %v1519 = vpop.f32.mrb[0].mxu0
        %v1520 = vadd.f32 1e-05, %v1519
        %v1521 = vpop.f32.mrb[0].mxu0
        %v1522 = vpop.f32.mrb[0].mxu0
        %v1523 = vadd.f32 1e-05, %v1522
        %v1524 = vpop.f32.mrb[0].mxu0
        %1525 = vmatprep.mubr.bf16.mxu0 0
        %1526 = vmatmul.mubr.bf16.gmra.mrb[0].mxu0 %v1457
        %v1527 = vpop.f32.mrb[0].mxu0
        %v1528 = vadd.f32 1e-05, %v1527
        %v1529 = vpop.f32.mrb[0].mxu0
        %v1530 = vpop.f32.mrb[0].mxu0
        %v1531 = vadd.f32 1e-05, %v1530
        %v1532 = vpop.f32.mrb[0].mxu0
        %1533 = vmatprep.mubr.bf16.mxu0 0
        %1534 = vmatmul.mubr.bf16.gmra.mrb[0].mxu0 %v1458
        %v1535 = vpop.f32.mrb[0].mxu0
        %v1536 = vadd.f32 1e-05, %v1535
        %v1537 = vpop.f32.mrb[0].mxu0
        %v1538 = vpop.f32.mrb[0].mxu0
        %v1539 = vadd.f32 1e-05, %v1538
        %v1540 = vpop.f32.mrb[0].mxu0
        %1541 = vmatprep.mubr.bf16.mxu0 0
        %1542 = vmatmul.mubr.bf16.gmra.mrb[0].mxu0 %v1459
        %v1543 = vpop.f32.mrb[0].mxu0
        %v1544 = vadd.f32 1e-05, %v1543
        %v1545 = vpop.f32.mrb[0].mxu0
        %v1546 = vpop.f32.mrb[0].mxu0
        %v1547 = vadd.f32 1e-05, %v1546
        %v1548 = vpop.f32.mrb[0].mxu0
        %1549 = vmatprep.mubr.bf16.mxu0 0
        %1550 = vmatmul.mubr.bf16.gmra.mrb[0].mxu0 %v1460
        %v1551 = vpop.f32.mrb[0].mxu0
        %v1552 = vadd.f32 1e-05, %v1551
        %v1553 = vpop.f32.mrb[0].mxu0
        %v1554 = vpop.f32.mrb[0].mxu0
        %v1555 = vadd.f32 1e-05, %v1554
        %v1556 = vpop.f32.mrb[0].mxu0
        %1557 = vdwg.mxu0
        %v1558 = vrsqrt.pop %v1496
        %v1559 = vrsqrt.pop %v1499
        %v1560 = vrsqrt.pop %v1504
        %v1561 = vrsqrt.pop %v1507
        %v1562 = vrsqrt.pop %v1512
        %v1563 = vrsqrt.pop %v1515
        %v1564 = vrsqrt.pop %v1520
        %v1565 = vrsqrt.pop %v1523
        %v1566 = vrsqrt.pop %v1528
        %v1567 = vrsqrt.pop %v1531
        %v1568 = vrsqrt.pop %v1536
        %v1569 = vrsqrt.pop %v1539
        %v1570 = vrsqrt.pop %v1544
        %v1571 = vrsqrt.pop %v1547
        %v1572 = vrsqrt.pop %v1552
        %v1573 = vrsqrt.pop %v1555
        %v1574 = vmul.f32 %v1421, %v1558
        %v1575 = vmul.f32 %v1422, %v1559
        %v1576 = vmul.f32 %v1423, %v1560
        %v1577 = vmul.f32 %v1424, %v1561
        %v1578 = vmul.f32 %v1425, %v1562
        %v1579 = vmul.f32 %v1426, %v1563
        %v1580 = vmul.f32 %v1427, %v1564
        %v1581 = vmul.f32 %v1428, %v1565
        %v1582 = vmul.f32 %v1429, %v1566
        %v1583 = vmul.f32 %v1430, %v1567
        %v1584 = vmul.f32 %v1431, %v1568
        %v1585 = vmul.f32 %v1432, %v1569
        %v1586 = vmul.f32 %v1433, %v1570
        %v1587 = vmul.f32 %v1434, %v1571
        %v1588 = vmul.f32 %v1435, %v1572
        %v1589 = vmul.f32 %v1436, %v1573
        %s1590 = scalar_lea.vmem %s6, 1
        %v1591 = vld [vmem:[%s1590] sm:$0x1]
        %v1593 = vlaneseq
        %v1594 = vshrl.u32 %v1593, 7
        %v1595 = vsub.s32 0, %v1594
        %v1596 = vrot.slane %v1591, %v1595
        %v1598 = vmul.f32 %v1574, %v1596
        %v1599 = vmul.f32 %v1575, %v1596
        %v1600 = vmul.f32 %v1576, %v1596
        %v1601 = vmul.f32 %v1577, %v1596
        %v1602 = vmul.f32 %v1578, %v1596
        %v1603 = vmul.f32 %v1579, %v1596
        %v1604 = vmul.f32 %v1580, %v1596
        %v1605 = vmul.f32 %v1581, %v1596
        %v1606 = vmul.f32 %v1582, %v1596
        %v1607 = vmul.f32 %v1583, %v1596
        %v1608 = vmul.f32 %v1584, %v1596
        %v1609 = vmul.f32 %v1585, %v1596
        %v1610 = vmul.f32 %v1586, %v1596
        %v1611 = vmul.f32 %v1587, %v1596
        %v1612 = vmul.f32 %v1588, %v1596
        %v1613 = vmul.f32 %v1589, %v1596
        %s1614 = scalar_lea.vmem %s7, 1
        %v1615 = vld [vmem:[%s1614] sm:$0x1]
        %v1617 = vlaneseq
        %v1618 = vshrl.u32 %v1617, 7
        %v1619 = vsub.s32 0, %v1618
        %v1620 = vrot.slane %v1615, %v1619
        %v1622 = vadd.f32 %v1598, %v1620
        %v1623 = vadd.f32 %v1599, %v1620
        %v1624 = vadd.f32 %v1600, %v1620
        %v1625 = vadd.f32 %v1601, %v1620
        %v1626 = vadd.f32 %v1602, %v1620
        %v1627 = vadd.f32 %v1603, %v1620
        %v1628 = vadd.f32 %v1604, %v1620
        %v1629 = vadd.f32 %v1605, %v1620
        %v1630 = vadd.f32 %v1606, %v1620
        %v1631 = vadd.f32 %v1607, %v1620
        %v1632 = vadd.f32 %v1608, %v1620
        %v1633 = vadd.f32 %v1609, %v1620
        %v1634 = vadd.f32 %v1610, %v1620
        %v1635 = vadd.f32 %v1611, %v1620
        %v1636 = vadd.f32 %v1612, %v1620
        %v1637 = vadd.f32 %v1613, %v1620
        %v1638 = vmax.f32 %v1622, 0.0
        %v1639 = vmax.f32 %v1623, 0.0
        %v1640 = vmax.f32 %v1624, 0.0
        %v1641 = vmax.f32 %v1625, 0.0
        %v1642 = vmax.f32 %v1626, 0.0
        %v1643 = vmax.f32 %v1627, 0.0
        %v1644 = vmax.f32 %v1628, 0.0
        %v1645 = vmax.f32 %v1629, 0.0
        %v1646 = vmax.f32 %v1630, 0.0
        %v1647 = vmax.f32 %v1631, 0.0
        %v1648 = vmax.f32 %v1632, 0.0
        %v1649 = vmax.f32 %v1633, 0.0
        %v1650 = vmax.f32 %v1634, 0.0
        %v1651 = vmax.f32 %v1635, 0.0
        %v1652 = vmax.f32 %v1636, 0.0
        %v1653 = vmax.f32 %v1637, 0.0
        %v1654 = vsel %vm1015, %v1638, 1.0
        %v1655 = vsel %vm1015, %v1639, 1.0
        %v1656 = vsel %vm1015, %v1640, 1.0
        %v1657 = vsel %vm1015, %v1641, 1.0
        %v1658 = vsel %vm1015, %v1642, 1.0
        %v1659 = vsel %vm1015, %v1643, 1.0
        %v1660 = vsel %vm1015, %v1644, 1.0
        %v1661 = vsel %vm1015, %v1645, 1.0
        %v1662 = vsel %vm1015, %v1646, 1.0
        %v1663 = vsel %vm1015, %v1647, 1.0
        %v1664 = vsel %vm1015, %v1648, 1.0
        %v1665 = vsel %vm1015, %v1649, 1.0
        %v1666 = vsel %vm1015, %v1650, 1.0
        %v1667 = vsel %vm1015, %v1651, 1.0
        %v1668 = vsel %vm1015, %v1652, 1.0
        %v1669 = vsel %vm1015, %v1653, 1.0
        %v1670 = vmul.f32 %v1300, %v1654
        %v1671 = vmul.f32 %v1301, %v1655
        %v1672 = vmul.f32 %v1302, %v1656
        %v1673 = vmul.f32 %v1303, %v1657
        %v1674 = vmul.f32 %v1304, %v1658
        %v1675 = vmul.f32 %v1305, %v1659
        %v1676 = vmul.f32 %v1306, %v1660
        %v1677 = vmul.f32 %v1307, %v1661
        %v1678 = vmul.f32 %v1308, %v1662
        %v1679 = vmul.f32 %v1309, %v1663
        %v1680 = vmul.f32 %v1310, %v1664
        %v1681 = vmul.f32 %v1311, %v1665
        %v1682 = vmul.f32 %v1312, %v1666
        %v1683 = vmul.f32 %v1313, %v1667
        %v1684 = vmul.f32 %v1314, %v1668
        %v1685 = vmul.f32 %v1315, %v1669
        %s1686 = scalar_lea.vmem %s5, 1
        %v1687 = vld [vmem:[%s1686] sm:$0x1]
        %v1689 = vlaneseq
        %v1690 = vshrl.u32 %v1689, 7
        %v1691 = vsub.s32 0, %v1690
        %v1692 = vrot.slane %v1687, %v1691
        %v1694 = vadd.f32 %v1670, %v1692
        %v1695 = vadd.f32 %v1671, %v1692
        %v1696 = vadd.f32 %v1672, %v1692
        %v1697 = vadd.f32 %v1673, %v1692
        %v1698 = vadd.f32 %v1674, %v1692
        %v1699 = vadd.f32 %v1675, %v1692
        %v1700 = vadd.f32 %v1676, %v1692
        %v1701 = vadd.f32 %v1677, %v1692
        %v1702 = vadd.f32 %v1678, %v1692
        %v1703 = vadd.f32 %v1679, %v1692
        %v1704 = vadd.f32 %v1680, %v1692
        %v1705 = vadd.f32 %v1681, %v1692
        %v1706 = vadd.f32 %v1682, %v1692
        %v1707 = vadd.f32 %v1683, %v1692
        %v1708 = vadd.f32 %v1684, %v1692
        %v1709 = vadd.f32 %v1685, %v1692
        %v1710 = vmul.f32 %v387, %v1694
        %v1711 = vmul.f32 %v388, %v1695
        %v1712 = vmul.f32 %v389, %v1696
        %v1713 = vmul.f32 %v390, %v1697
        %v1714 = vmul.f32 %v391, %v1698
        %v1715 = vmul.f32 %v392, %v1699
        %v1716 = vmul.f32 %v393, %v1700
        %v1717 = vmul.f32 %v394, %v1701
        %v1718 = vmul.f32 %v395, %v1702
        %v1719 = vmul.f32 %v396, %v1703
        %v1720 = vmul.f32 %v397, %v1704
        %v1721 = vmul.f32 %v398, %v1705
        %v1722 = vmul.f32 %v399, %v1706
        %v1723 = vmul.f32 %v400, %v1707
        %v1724 = vmul.f32 %v401, %v1708
        %v1725 = vmul.f32 %v402, %v1709
        %v1726 = vadd.f32 %v1710, %v1087
        %v1727 = vadd.f32 %v1711, %v1088
        %v1728 = vadd.f32 %v1712, %v1089
        %v1729 = vadd.f32 %v1713, %v1090
        %v1730 = vadd.f32 %v1714, %v1091
        %v1731 = vadd.f32 %v1715, %v1092
        %v1732 = vadd.f32 %v1716, %v1093
        %v1733 = vadd.f32 %v1717, %v1094
        %v1734 = vadd.f32 %v1718, %v1095
        %v1735 = vadd.f32 %v1719, %v1096
        %v1736 = vadd.f32 %v1720, %v1097
        %v1737 = vadd.f32 %v1721, %v1098
        %v1738 = vadd.f32 %v1722, %v1099
        %v1739 = vadd.f32 %v1723, %v1100
        %v1740 = vadd.f32 %v1724, %v1101
        %v1741 = vadd.f32 %v1725, %v1102
        %v1742 = vpack.c.bf16 %v1727, %v1726
        %v1743 = vpack.c.bf16 %v1729, %v1728
        %v1744 = vpack.c.bf16 %v1731, %v1730
        %v1745 = vpack.c.bf16 %v1733, %v1732
        %v1746 = vpack.c.bf16 %v1735, %v1734
        %v1747 = vpack.c.bf16 %v1737, %v1736
        %v1748 = vpack.c.bf16 %v1739, %v1738
        %v1749 = vpack.c.bf16 %v1741, %v1740
        %s1750 = scalar_lea.vmem [#allocation9], 128
        %v1751 = vld [vmem:[%s1750] sm:$0xf]
        %v1752 = vld [vmem:[%s1750 + $0x4] sm:$0xf]
        %v1753 = vld [vmem:[%s1750 + $0x8] sm:$0xf]
        %v1754 = vld [vmem:[%s1750 + $0xc] sm:$0xf]
        %v1755 = vld [vmem:[%s1750 + $0x10] sm:$0xf]
        %v1756 = vld [vmem:[%s1750 + $0x14] sm:$0xf]
        %v1757 = vld [vmem:[%s1750 + $0x18] sm:$0xf]
        %v1758 = vld [vmem:[%s1750 + $0x1c] sm:$0xf]
        %v1759 = vld [vmem:[%s1750 + $0x20] sm:$0xf]
        %v1760 = vld [vmem:[%s1750 + $0x24] sm:$0xf]
        %v1761 = vld [vmem:[%s1750 + $0x28] sm:$0xf]
        %v1762 = vld [vmem:[%s1750 + $0x2c] sm:$0xf]
        %v1763 = vld [vmem:[%s1750 + $0x30] sm:$0xf]
        %v1764 = vld [vmem:[%s1750 + $0x34] sm:$0xf]
        %v1765 = vld [vmem:[%s1750 + $0x38] sm:$0xf]
        %v1766 = vld [vmem:[%s1750 + $0x3c] sm:$0xf]
        %v1783 = vunpack.c.l.b16 %v1751
        %v1784 = vunpack.c.l.b16 %v1752
        %v1785 = vunpack.c.l.b16 %v1753
        %v1786 = vunpack.c.l.b16 %v1754
        %v1787 = vunpack.c.l.b16 %v1755
        %v1788 = vunpack.c.l.b16 %v1756
        %v1789 = vunpack.c.l.b16 %v1757
        %v1790 = vunpack.c.l.b16 %v1758
        %v1791 = vunpack.c.l.b16 %v1759
        %v1792 = vunpack.c.l.b16 %v1760
        %v1793 = vunpack.c.l.b16 %v1761
        %v1794 = vunpack.c.l.b16 %v1762
        %v1795 = vunpack.c.l.b16 %v1763
        %v1796 = vunpack.c.l.b16 %v1764
        %v1797 = vunpack.c.l.b16 %v1765
        %v1798 = vunpack.c.l.b16 %v1766
        %v1799 = vpack.c.b16 %v1784, %v1783
        %v1800 = vpack.c.b16 %v1786, %v1785
        %v1801 = vpack.c.b16 %v1788, %v1787
        %v1802 = vpack.c.b16 %v1790, %v1789
        %v1803 = vpack.c.b16 %v1792, %v1791
        %v1804 = vpack.c.b16 %v1794, %v1793
        %v1805 = vpack.c.b16 %v1796, %v1795
        %v1806 = vpack.c.b16 %v1798, %v1797
        %1815 = vmatprep.subr.bf16.mxu0 0
        %1816 = vmatpush1.bf16.msra.mxu0 %v1799
        %1817 = vmatprep.subr.bf16.mxu0 0
        %1818 = vmatpush1.bf16.msra.mxu0 %v1800
        %1819 = vmatprep.subr.bf16.mxu0 0
        %1820 = vmatpush1.bf16.msra.mxu0 %v1801
        %1821 = vmatprep.subr.bf16.mxu0 0
        %1822 = vmatpush1.bf16.msra.mxu0 %v1802
        %1823 = vmatprep.subr.bf16.mxu0 0
        %1824 = vmatpush1.bf16.msra.mxu0 %v1803
        %1825 = vmatprep.subr.bf16.mxu0 0
        %1826 = vmatpush1.bf16.msra.mxu0 %v1804
        %1827 = vmatprep.subr.bf16.mxu0 0
        %1828 = vmatpush1.bf16.msra.mxu0 %v1805
        %1829 = vmatprep.subr.bf16.mxu0 0
        %1830 = vmatpush1.bf16.msra.mxu0 %v1806
        %1831 = vmatprep.subr.bf16.mxu0 0
        %1832 = vmatpush1.bf16.msra.mxu0 0
        %1833 = vmatprep.subr.bf16.mxu0 0
        %1834 = vmatpush1.bf16.msra.mxu0 0
        %1835 = vmatprep.subr.bf16.mxu0 0
        %1836 = vmatpush1.bf16.msra.mxu0 0
        %1837 = vmatprep.subr.bf16.mxu0 0
        %1838 = vmatpush1.bf16.msra.mxu0 0
        %1839 = vmatprep.subr.bf16.mxu0 0
        %1840 = vmatpush1.bf16.msra.mxu0 0
        %1841 = vmatprep.subr.bf16.mxu0 0
        %1842 = vmatpush1.bf16.msra.mxu0 0
        %1843 = vmatprep.subr.bf16.mxu0 0
        %1844 = vmatpush1.bf16.msra.mxu0 0
        %1845 = vmatprep.subr.bf16.mxu0 0
        %1846 = vmatpush1.bf16.msra.mxu0 0
        %1847 = vmatprep.mubr.bf16.mxu0 0
        %1848 = vmatmul.mubr.bf16.gmra.mrb[0].mxu0 %v1742
        %v1849 = vpop.f32.mrb[0].mxu0
        %v1850 = vadd.f32 0.0, %v1849
        %v1851 = vpop.f32.mrb[0].mxu0
        %v1852 = vpop.f32.mrb[0].mxu0
        %v1853 = vadd.f32 0.0, %v1852
        %v1854 = vpop.f32.mrb[0].mxu0
        %1855 = vmatprep.mubr.bf16.mxu0 0
        %1856 = vmatmul.mubr.bf16.gmra.mrb[0].mxu0 %v1743
        %v1857 = vpop.f32.mrb[0].mxu0
        %v1858 = vadd.f32 0.0, %v1857
        %v1859 = vpop.f32.mrb[0].mxu0
        %v1860 = vpop.f32.mrb[0].mxu0
        %v1861 = vadd.f32 0.0, %v1860
        %v1862 = vpop.f32.mrb[0].mxu0
        %1863 = vmatprep.mubr.bf16.mxu0 0
        %1864 = vmatmul.mubr.bf16.gmra.mrb[0].mxu0 %v1744
        %v1865 = vpop.f32.mrb[0].mxu0
        %v1866 = vadd.f32 0.0, %v1865
        %v1867 = vpop.f32.mrb[0].mxu0
        %v1868 = vpop.f32.mrb[0].mxu0
        %v1869 = vadd.f32 0.0, %v1868
        %v1870 = vpop.f32.mrb[0].mxu0
        %1871 = vmatprep.mubr.bf16.mxu0 0
        %1872 = vmatmul.mubr.bf16.gmra.mrb[0].mxu0 %v1745
        %v1873 = vpop.f32.mrb[0].mxu0
        %v1874 = vadd.f32 0.0, %v1873
        %v1875 = vpop.f32.mrb[0].mxu0
        %v1876 = vpop.f32.mrb[0].mxu0
        %v1877 = vadd.f32 0.0, %v1876
        %v1878 = vpop.f32.mrb[0].mxu0
        %1879 = vmatprep.mubr.bf16.mxu0 0
        %1880 = vmatmul.mubr.bf16.gmra.mrb[0].mxu0 %v1746
        %v1881 = vpop.f32.mrb[0].mxu0
        %v1882 = vadd.f32 0.0, %v1881
        %v1883 = vpop.f32.mrb[0].mxu0
        %v1884 = vpop.f32.mrb[0].mxu0
        %v1885 = vadd.f32 0.0, %v1884
        %v1886 = vpop.f32.mrb[0].mxu0
        %1887 = vmatprep.mubr.bf16.mxu0 0
        %1888 = vmatmul.mubr.bf16.gmra.mrb[0].mxu0 %v1747
        %v1889 = vpop.f32.mrb[0].mxu0
        %v1890 = vadd.f32 0.0, %v1889
        %v1891 = vpop.f32.mrb[0].mxu0
        %v1892 = vpop.f32.mrb[0].mxu0
        %v1893 = vadd.f32 0.0, %v1892
        %v1894 = vpop.f32.mrb[0].mxu0
        %1895 = vmatprep.mubr.bf16.mxu0 0
        %1896 = vmatmul.mubr.bf16.gmra.mrb[0].mxu0 %v1748
        %v1897 = vpop.f32.mrb[0].mxu0
        %v1898 = vadd.f32 0.0, %v1897
        %v1899 = vpop.f32.mrb[0].mxu0
        %v1900 = vpop.f32.mrb[0].mxu0
        %v1901 = vadd.f32 0.0, %v1900
        %v1902 = vpop.f32.mrb[0].mxu0
        %1903 = vmatprep.mubr.bf16.mxu0 0
        %1904 = vmatmul.mubr.bf16.gmra.mrb[0].mxu0 %v1749
        %v1905 = vpop.f32.mrb[0].mxu0
        %v1906 = vadd.f32 0.0, %v1905
        %v1907 = vpop.f32.mrb[0].mxu0
        %v1908 = vpop.f32.mrb[0].mxu0
        %v1909 = vadd.f32 0.0, %v1908
        %v1910 = vpop.f32.mrb[0].mxu0
        %1911 = vdwg.mxu0
        %s1912 = sadd.s32 %s1273, 2
        %s1913 = smul.u32 %s1912, 128
        %s1914 = sadd.s32 %s1913, %s1278
        %s1915 = sld [smem:[#allocation3 + %s1914]]
        %v1916 = vstv %s1915
        %v1917 = vmul.f32 %v1850, %v1916
        %v1918 = vmul.f32 %v1853, %v1916
        %v1919 = vmul.f32 %v1858, %v1916
        %v1920 = vmul.f32 %v1861, %v1916
        %v1921 = vmul.f32 %v1866, %v1916
        %v1922 = vmul.f32 %v1869, %v1916
        %v1923 = vmul.f32 %v1874, %v1916
        %v1924 = vmul.f32 %v1877, %v1916
        %v1925 = vmul.f32 %v1882, %v1916
        %v1926 = vmul.f32 %v1885, %v1916
        %v1927 = vmul.f32 %v1890, %v1916
        %v1928 = vmul.f32 %v1893, %v1916
        %v1929 = vmul.f32 %v1898, %v1916
        %v1930 = vmul.f32 %v1901, %v1916
        %v1931 = vmul.f32 %v1906, %v1916
        %v1932 = vmul.f32 %v1909, %v1916
        %s1933 = sld [smem:[#allocation4 + %s1914]]
        %v1934 = vstv %s1933
        %v1935 = vadd.f32 %v1917, %v1934
        %v1936 = vadd.f32 %v1918, %v1934
        %v1937 = vadd.f32 %v1919, %v1934
        %v1938 = vadd.f32 %v1920, %v1934
        %v1939 = vadd.f32 %v1921, %v1934
        %v1940 = vadd.f32 %v1922, %v1934
        %v1941 = vadd.f32 %v1923, %v1934
        %v1942 = vadd.f32 %v1924, %v1934
        %v1943 = vadd.f32 %v1925, %v1934
        %v1944 = vadd.f32 %v1926, %v1934
        %v1945 = vadd.f32 %v1927, %v1934
        %v1946 = vadd.f32 %v1928, %v1934
        %v1947 = vadd.f32 %v1929, %v1934
        %v1948 = vadd.f32 %v1930, %v1934
        %v1949 = vadd.f32 %v1931, %v1934
        %v1950 = vadd.f32 %v1932, %v1934
        %v1951 = vpack.c.bf16 %v1936, %v1935
        %v1952 = vpack.c.bf16 %v1938, %v1937
        %v1953 = vpack.c.bf16 %v1940, %v1939
        %v1954 = vpack.c.bf16 %v1942, %v1941
        %v1955 = vpack.c.bf16 %v1944, %v1943
        %v1956 = vpack.c.bf16 %v1946, %v1945
        %v1957 = vpack.c.bf16 %v1948, %v1947
        %v1958 = vpack.c.bf16 %v1950, %v1949
        %1959 = vmatprep.subr.bf16.mxu0 0
        %1960 = vmatpush1.bf16.msra.mxu0 %v666
        %1961 = vmatprep.subr.bf16.mxu0 0
        %1962 = vmatpush1.bf16.msra.mxu0 %v667
        %1963 = vmatprep.subr.bf16.mxu0 0
        %1964 = vmatpush1.bf16.msra.mxu0 %v668
        %1965 = vmatprep.subr.bf16.mxu0 0
        %1966 = vmatpush1.bf16.msra.mxu0 %v669
        %1967 = vmatprep.subr.bf16.mxu0 0
        %1968 = vmatpush1.bf16.msra.mxu0 %v670
        %1969 = vmatprep.subr.bf16.mxu0 0
        %1970 = vmatpush1.bf16.msra.mxu0 %v671
        %1971 = vmatprep.subr.bf16.mxu0 0
        %1972 = vmatpush1.bf16.msra.mxu0 %v672
        %1973 = vmatprep.subr.bf16.mxu0 0
        %1974 = vmatpush1.bf16.msra.mxu0 %v673
        %1975 = vmatprep.subr.bf16.mxu0 0
        %1976 = vmatpush1.bf16.msra.mxu0 0
        %1977 = vmatprep.subr.bf16.mxu0 0
        %1978 = vmatpush1.bf16.msra.mxu0 0
        %1979 = vmatprep.subr.bf16.mxu0 0
        %1980 = vmatpush1.bf16.msra.mxu0 0
        %1981 = vmatprep.subr.bf16.mxu0 0
        %1982 = vmatpush1.bf16.msra.mxu0 0
        %1983 = vmatprep.subr.bf16.mxu0 0
        %1984 = vmatpush1.bf16.msra.mxu0 0
        %1985 = vmatprep.subr.bf16.mxu0 0
        %1986 = vmatpush1.bf16.msra.mxu0 0
        %1987 = vmatprep.subr.bf16.mxu0 0
        %1988 = vmatpush1.bf16.msra.mxu0 0
        %1989 = vmatprep.subr.bf16.mxu0 0
        %1990 = vmatpush1.bf16.msra.mxu0 0
        %1991 = vmatprep.mubr.bf16.mxu0 0
        %1992 = vmatmul.mubr.bf16.gmra.mrb[0].mxu0 %v1951
        %v1993 = vpop.f32.mrb[0].mxu0
        %v1994 = vadd.f32 0.0, %v1993
        %v1995 = vpop.f32.mrb[0].mxu0
        %v1996 = vpop.f32.mrb[0].mxu0
        %v1997 = vadd.f32 0.0, %v1996
        %v1998 = vpop.f32.mrb[0].mxu0
        %1999 = vmatprep.mubr.bf16.mxu0 0
        %2000 = vmatmul.mubr.bf16.gmra.mrb[0].mxu0 %v1952
        %v2001 = vpop.f32.mrb[0].mxu0
        %v2002 = vadd.f32 0.0, %v2001
        %v2003 = vpop.f32.mrb[0].mxu0
        %v2004 = vpop.f32.mrb[0].mxu0
        %v2005 = vadd.f32 0.0, %v2004
        %v2006 = vpop.f32.mrb[0].mxu0
        %2007 = vmatprep.mubr.bf16.mxu0 0
        %2008 = vmatmul.mubr.bf16.gmra.mrb[0].mxu0 %v1953
        %v2009 = vpop.f32.mrb[0].mxu0
        %v2010 = vadd.f32 0.0, %v2009
        %v2011 = vpop.f32.mrb[0].mxu0
        %v2012 = vpop.f32.mrb[0].mxu0
        %v2013 = vadd.f32 0.0, %v2012
        %v2014 = vpop.f32.mrb[0].mxu0
        %2015 = vmatprep.mubr.bf16.mxu0 0
        %2016 = vmatmul.mubr.bf16.gmra.mrb[0].mxu0 %v1954
        %v2017 = vpop.f32.mrb[0].mxu0
        %v2018 = vadd.f32 0.0, %v2017
        %v2019 = vpop.f32.mrb[0].mxu0
        %v2020 = vpop.f32.mrb[0].mxu0
        %v2021 = vadd.f32 0.0, %v2020
        %v2022 = vpop.f32.mrb[0].mxu0
        %2023 = vmatprep.mubr.bf16.mxu0 0
        %2024 = vmatmul.mubr.bf16.gmra.mrb[0].mxu0 %v1955
        %v2025 = vpop.f32.mrb[0].mxu0
        %v2026 = vadd.f32 0.0, %v2025
        %v2027 = vpop.f32.mrb[0].mxu0
        %v2028 = vpop.f32.mrb[0].mxu0
        %v2029 = vadd.f32 0.0, %v2028
        %v2030 = vpop.f32.mrb[0].mxu0
        %2031 = vmatprep.mubr.bf16.mxu0 0
        %2032 = vmatmul.mubr.bf16.gmra.mrb[0].mxu0 %v1956
        %v2033 = vpop.f32.mrb[0].mxu0
        %v2034 = vadd.f32 0.0, %v2033
        %v2035 = vpop.f32.mrb[0].mxu0
        %v2036 = vpop.f32.mrb[0].mxu0
        %v2037 = vadd.f32 0.0, %v2036
        %v2038 = vpop.f32.mrb[0].mxu0
        %2039 = vmatprep.mubr.bf16.mxu0 0
        %2040 = vmatmul.mubr.bf16.gmra.mrb[0].mxu0 %v1957
        %v2041 = vpop.f32.mrb[0].mxu0
        %v2042 = vadd.f32 0.0, %v2041
        %v2043 = vpop.f32.mrb[0].mxu0
        %v2044 = vpop.f32.mrb[0].mxu0
        %v2045 = vadd.f32 0.0, %v2044
        %v2046 = vpop.f32.mrb[0].mxu0
        %2047 = vmatprep.mubr.bf16.mxu0 0
        %2048 = vmatmul.mubr.bf16.gmra.mrb[0].mxu0 %v1958
        %v2049 = vpop.f32.mrb[0].mxu0
        %v2050 = vadd.f32 0.0, %v2049
        %v2051 = vpop.f32.mrb[0].mxu0
        %v2052 = vpop.f32.mrb[0].mxu0
        %v2053 = vadd.f32 0.0, %v2052
        %v2054 = vpop.f32.mrb[0].mxu0
        %2055 = vdwg.mxu0
        %v2056 = vsub.f32 %v1935, %v1994
        %v2057 = vsub.f32 %v1936, %v1997
        %v2058 = vsub.f32 %v1937, %v2002
        %v2059 = vsub.f32 %v1938, %v2005
        %v2060 = vsub.f32 %v1939, %v2010
        %v2061 = vsub.f32 %v1940, %v2013
        %v2062 = vsub.f32 %v1941, %v2018
        %v2063 = vsub.f32 %v1942, %v2021
        %v2064 = vsub.f32 %v1943, %v2026
        %v2065 = vsub.f32 %v1944, %v2029
        %v2066 = vsub.f32 %v1945, %v2034
        %v2067 = vsub.f32 %v1946, %v2037
        %v2068 = vsub.f32 %v1947, %v2042
        %v2069 = vsub.f32 %v1948, %v2045
        %v2070 = vsub.f32 %v1949, %v2050
        %v2071 = vsub.f32 %v1950, %v2053
        %v2072 = vmul.f32 %v2056, %v2056
        %v2073 = vmul.f32 %v2057, %v2057
        %v2074 = vmul.f32 %v2058, %v2058
        %v2075 = vmul.f32 %v2059, %v2059
        %v2076 = vmul.f32 %v2060, %v2060
        %v2077 = vmul.f32 %v2061, %v2061
        %v2078 = vmul.f32 %v2062, %v2062
        %v2079 = vmul.f32 %v2063, %v2063
        %v2080 = vmul.f32 %v2064, %v2064
        %v2081 = vmul.f32 %v2065, %v2065
        %v2082 = vmul.f32 %v2066, %v2066
        %v2083 = vmul.f32 %v2067, %v2067
        %v2084 = vmul.f32 %v2068, %v2068
        %v2085 = vmul.f32 %v2069, %v2069
        %v2086 = vmul.f32 %v2070, %v2070
        %v2087 = vmul.f32 %v2071, %v2071
        %v2088 = vpack.c.bf16 %v2073, %v2072
        %v2089 = vpack.c.bf16 %v2075, %v2074
        %v2090 = vpack.c.bf16 %v2077, %v2076
        %v2091 = vpack.c.bf16 %v2079, %v2078
        %v2092 = vpack.c.bf16 %v2081, %v2080
        %v2093 = vpack.c.bf16 %v2083, %v2082
        %v2094 = vpack.c.bf16 %v2085, %v2084
        %v2095 = vpack.c.bf16 %v2087, %v2086
        %2096 = vmatprep.subr.bf16.mxu0 0
        %2097 = vmatpush1.bf16.msra.mxu0 %v666
        %2098 = vmatprep.subr.bf16.mxu0 0
        %2099 = vmatpush1.bf16.msra.mxu0 %v667
        %2100 = vmatprep.subr.bf16.mxu0 0
        %2101 = vmatpush1.bf16.msra.mxu0 %v668
        %2102 = vmatprep.subr.bf16.mxu0 0
        %2103 = vmatpush1.bf16.msra.mxu0 %v669
        %2104 = vmatprep.subr.bf16.mxu0 0
        %2105 = vmatpush1.bf16.msra.mxu0 %v670
        %2106 = vmatprep.subr.bf16.mxu0 0
        %2107 = vmatpush1.bf16.msra.mxu0 %v671
        %2108 = vmatprep.subr.bf16.mxu0 0
        %2109 = vmatpush1.bf16.msra.mxu0 %v672
        %2110 = vmatprep.subr.bf16.mxu0 0
        %2111 = vmatpush1.bf16.msra.mxu0 %v673
        %2112 = vmatprep.subr.bf16.mxu0 0
        %2113 = vmatpush1.bf16.msra.mxu0 0
        %2114 = vmatprep.subr.bf16.mxu0 0
        %2115 = vmatpush1.bf16.msra.mxu0 0
        %2116 = vmatprep.subr.bf16.mxu0 0
        %2117 = vmatpush1.bf16.msra.mxu0 0
        %2118 = vmatprep.subr.bf16.mxu0 0
        %2119 = vmatpush1.bf16.msra.mxu0 0
        %2120 = vmatprep.subr.bf16.mxu0 0
        %2121 = vmatpush1.bf16.msra.mxu0 0
        %2122 = vmatprep.subr.bf16.mxu0 0
        %2123 = vmatpush1.bf16.msra.mxu0 0
        %2124 = vmatprep.subr.bf16.mxu0 0
        %2125 = vmatpush1.bf16.msra.mxu0 0
        %2126 = vmatprep.subr.bf16.mxu0 0
        %2127 = vmatpush1.bf16.msra.mxu0 0
        %2128 = vmatprep.mubr.bf16.mxu0 0
        %2129 = vmatmul.mubr.bf16.gmra.mrb[0].mxu0 %v2088
        %v2130 = vpop.f32.mrb[0].mxu0
        %v2131 = vadd.f32 1e-05, %v2130
        %v2132 = vpop.f32.mrb[0].mxu0
        %v2133 = vpop.f32.mrb[0].mxu0
        %v2134 = vadd.f32 1e-05, %v2133
        %v2135 = vpop.f32.mrb[0].mxu0
        %2136 = vmatprep.mubr.bf16.mxu0 0
        %2137 = vmatmul.mubr.bf16.gmra.mrb[0].mxu0 %v2089
        %v2138 = vpop.f32.mrb[0].mxu0
        %v2139 = vadd.f32 1e-05, %v2138
        %v2140 = vpop.f32.mrb[0].mxu0
        %v2141 = vpop.f32.mrb[0].mxu0
        %v2142 = vadd.f32 1e-05, %v2141
        %v2143 = vpop.f32.mrb[0].mxu0
        %2144 = vmatprep.mubr.bf16.mxu0 0
        %2145 = vmatmul.mubr.bf16.gmra.mrb[0].mxu0 %v2090
        %v2146 = vpop.f32.mrb[0].mxu0
        %v2147 = vadd.f32 1e-05, %v2146
        %v2148 = vpop.f32.mrb[0].mxu0
        %v2149 = vpop.f32.mrb[0].mxu0
        %v2150 = vadd.f32 1e-05, %v2149
        %v2151 = vpop.f32.mrb[0].mxu0
        %2152 = vmatprep.mubr.bf16.mxu0 0
        %2153 = vmatmul.mubr.bf16.gmra.mrb[0].mxu0 %v2091
        %v2154 = vpop.f32.mrb[0].mxu0
        %v2155 = vadd.f32 1e-05, %v2154
        %v2156 = vpop.f32.mrb[0].mxu0
        %v2157 = vpop.f32.mrb[0].mxu0
        %v2158 = vadd.f32 1e-05, %v2157
        %v2159 = vpop.f32.mrb[0].mxu0
        %2160 = vmatprep.mubr.bf16.mxu0 0
        %2161 = vmatmul.mubr.bf16.gmra.mrb[0].mxu0 %v2092
        %v2162 = vpop.f32.mrb[0].mxu0
        %v2163 = vadd.f32 1e-05, %v2162
        %v2164 = vpop.f32.mrb[0].mxu0
        %v2165 = vpop.f32.mrb[0].mxu0
        %v2166 = vadd.f32 1e-05, %v2165
        %v2167 = vpop.f32.mrb[0].mxu0
        %2168 = vmatprep.mubr.bf16.mxu0 0
        %2169 = vmatmul.mubr.bf16.gmra.mrb[0].mxu0 %v2093
        %v2170 = vpop.f32.mrb[0].mxu0
        %v2171 = vadd.f32 1e-05, %v2170
        %v2172 = vpop.f32.mrb[0].mxu0
        %v2173 = vpop.f32.mrb[0].mxu0
        %v2174 = vadd.f32 1e-05, %v2173
        %v2175 = vpop.f32.mrb[0].mxu0
        %2176 = vmatprep.mubr.bf16.mxu0 0
        %2177 = vmatmul.mubr.bf16.gmra.mrb[0].mxu0 %v2094
        %v2178 = vpop.f32.mrb[0].mxu0
        %v2179 = vadd.f32 1e-05, %v2178
        %v2180 = vpop.f32.mrb[0].mxu0
        %v2181 = vpop.f32.mrb[0].mxu0
        %v2182 = vadd.f32 1e-05, %v2181
        %v2183 = vpop.f32.mrb[0].mxu0
        %2184 = vmatprep.mubr.bf16.mxu0 0
        %2185 = vmatmul.mubr.bf16.gmra.mrb[0].mxu0 %v2095
        %v2186 = vpop.f32.mrb[0].mxu0
        %v2187 = vadd.f32 1e-05, %v2186
        %v2188 = vpop.f32.mrb[0].mxu0
        %v2189 = vpop.f32.mrb[0].mxu0
        %v2190 = vadd.f32 1e-05, %v2189
        %v2191 = vpop.f32.mrb[0].mxu0
        %2192 = vdwg.mxu0
        %v2193 = vrsqrt.pop %v2131
        %v2194 = vrsqrt.pop %v2134
        %v2195 = vrsqrt.pop %v2139
        %v2196 = vrsqrt.pop %v2142
        %v2197 = vrsqrt.pop %v2147
        %v2198 = vrsqrt.pop %v2150
        %v2199 = vrsqrt.pop %v2155
        %v2200 = vrsqrt.pop %v2158
        %v2201 = vrsqrt.pop %v2163
        %v2202 = vrsqrt.pop %v2166
        %v2203 = vrsqrt.pop %v2171
        %v2204 = vrsqrt.pop %v2174
        %v2205 = vrsqrt.pop %v2179
        %v2206 = vrsqrt.pop %v2182
        %v2207 = vrsqrt.pop %v2187
        %v2208 = vrsqrt.pop %v2190
        %v2209 = vmul.f32 %v2056, %v2193
        %v2210 = vmul.f32 %v2057, %v2194
        %v2211 = vmul.f32 %v2058, %v2195
        %v2212 = vmul.f32 %v2059, %v2196
        %v2213 = vmul.f32 %v2060, %v2197
        %v2214 = vmul.f32 %v2061, %v2198
        %v2215 = vmul.f32 %v2062, %v2199
        %v2216 = vmul.f32 %v2063, %v2200
        %v2217 = vmul.f32 %v2064, %v2201
        %v2218 = vmul.f32 %v2065, %v2202
        %v2219 = vmul.f32 %v2066, %v2203
        %v2220 = vmul.f32 %v2067, %v2204
        %v2221 = vmul.f32 %v2068, %v2205
        %v2222 = vmul.f32 %v2069, %v2206
        %v2223 = vmul.f32 %v2070, %v2207
        %v2224 = vmul.f32 %v2071, %v2208
        %s2225 = scalar_lea.vmem %s6, 2
        %v2226 = vld [vmem:[%s2225] sm:$0x1]
        %v2228 = vlaneseq
        %v2229 = vshrl.u32 %v2228, 7
        %v2230 = vsub.s32 0, %v2229
        %v2231 = vrot.slane %v2226, %v2230
        %v2233 = vmul.f32 %v2209, %v2231
        %v2234 = vmul.f32 %v2210, %v2231
        %v2235 = vmul.f32 %v2211, %v2231
        %v2236 = vmul.f32 %v2212, %v2231
        %v2237 = vmul.f32 %v2213, %v2231
        %v2238 = vmul.f32 %v2214, %v2231
        %v2239 = vmul.f32 %v2215, %v2231
        %v2240 = vmul.f32 %v2216, %v2231
        %v2241 = vmul.f32 %v2217, %v2231
        %v2242 = vmul.f32 %v2218, %v2231
        %v2243 = vmul.f32 %v2219, %v2231
        %v2244 = vmul.f32 %v2220, %v2231
        %v2245 = vmul.f32 %v2221, %v2231
        %v2246 = vmul.f32 %v2222, %v2231
        %v2247 = vmul.f32 %v2223, %v2231
        %v2248 = vmul.f32 %v2224, %v2231
        %s2249 = scalar_lea.vmem %s7, 2
        %v2250 = vld [vmem:[%s2249] sm:$0x1]
        %v2252 = vlaneseq
        %v2253 = vshrl.u32 %v2252, 7
        %v2254 = vsub.s32 0, %v2253
        %v2255 = vrot.slane %v2250, %v2254
        %v2257 = vadd.f32 %v2233, %v2255
        %v2258 = vadd.f32 %v2234, %v2255
        %v2259 = vadd.f32 %v2235, %v2255
        %v2260 = vadd.f32 %v2236, %v2255
        %v2261 = vadd.f32 %v2237, %v2255
        %v2262 = vadd.f32 %v2238, %v2255
        %v2263 = vadd.f32 %v2239, %v2255
        %v2264 = vadd.f32 %v2240, %v2255
        %v2265 = vadd.f32 %v2241, %v2255
        %v2266 = vadd.f32 %v2242, %v2255
        %v2267 = vadd.f32 %v2243, %v2255
        %v2268 = vadd.f32 %v2244, %v2255
        %v2269 = vadd.f32 %v2245, %v2255
        %v2270 = vadd.f32 %v2246, %v2255
        %v2271 = vadd.f32 %v2247, %v2255
        %v2272 = vadd.f32 %v2248, %v2255
        %v2273 = vmax.f32 %v2257, 0.0
        %v2274 = vmax.f32 %v2258, 0.0
        %v2275 = vmax.f32 %v2259, 0.0
        %v2276 = vmax.f32 %v2260, 0.0
        %v2277 = vmax.f32 %v2261, 0.0
        %v2278 = vmax.f32 %v2262, 0.0
        %v2279 = vmax.f32 %v2263, 0.0
        %v2280 = vmax.f32 %v2264, 0.0
        %v2281 = vmax.f32 %v2265, 0.0
        %v2282 = vmax.f32 %v2266, 0.0
        %v2283 = vmax.f32 %v2267, 0.0
        %v2284 = vmax.f32 %v2268, 0.0
        %v2285 = vmax.f32 %v2269, 0.0
        %v2286 = vmax.f32 %v2270, 0.0
        %v2287 = vmax.f32 %v2271, 0.0
        %v2288 = vmax.f32 %v2272, 0.0
        %v2289 = vsel %vm1015, %v2273, 1.0
        %v2290 = vsel %vm1015, %v2274, 1.0
        %v2291 = vsel %vm1015, %v2275, 1.0
        %v2292 = vsel %vm1015, %v2276, 1.0
        %v2293 = vsel %vm1015, %v2277, 1.0
        %v2294 = vsel %vm1015, %v2278, 1.0
        %v2295 = vsel %vm1015, %v2279, 1.0
        %v2296 = vsel %vm1015, %v2280, 1.0
        %v2297 = vsel %vm1015, %v2281, 1.0
        %v2298 = vsel %vm1015, %v2282, 1.0
        %v2299 = vsel %vm1015, %v2283, 1.0
        %v2300 = vsel %vm1015, %v2284, 1.0
        %v2301 = vsel %vm1015, %v2285, 1.0
        %v2302 = vsel %vm1015, %v2286, 1.0
        %v2303 = vsel %vm1015, %v2287, 1.0
        %v2304 = vsel %vm1015, %v2288, 1.0
        %v2305 = vmul.f32 %v1935, %v2289
        %v2306 = vmul.f32 %v1936, %v2290
        %v2307 = vmul.f32 %v1937, %v2291
        %v2308 = vmul.f32 %v1938, %v2292
        %v2309 = vmul.f32 %v1939, %v2293
        %v2310 = vmul.f32 %v1940, %v2294
        %v2311 = vmul.f32 %v1941, %v2295
        %v2312 = vmul.f32 %v1942, %v2296
        %v2313 = vmul.f32 %v1943, %v2297
        %v2314 = vmul.f32 %v1944, %v2298
        %v2315 = vmul.f32 %v1945, %v2299
        %v2316 = vmul.f32 %v1946, %v2300
        %v2317 = vmul.f32 %v1947, %v2301
        %v2318 = vmul.f32 %v1948, %v2302
        %v2319 = vmul.f32 %v1949, %v2303
        %v2320 = vmul.f32 %v1950, %v2304
        %s2321 = scalar_lea.vmem %s5, 2
        %v2322 = vld [vmem:[%s2321] sm:$0x1]
        %v2324 = vlaneseq
        %v2325 = vshrl.u32 %v2324, 7
        %v2326 = vsub.s32 0, %v2325
        %v2327 = vrot.slane %v2322, %v2326
        %v2329 = vadd.f32 %v2305, %v2327
        %v2330 = vadd.f32 %v2306, %v2327
        %v2331 = vadd.f32 %v2307, %v2327
        %v2332 = vadd.f32 %v2308, %v2327
        %v2333 = vadd.f32 %v2309, %v2327
        %v2334 = vadd.f32 %v2310, %v2327
        %v2335 = vadd.f32 %v2311, %v2327
        %v2336 = vadd.f32 %v2312, %v2327
        %v2337 = vadd.f32 %v2313, %v2327
        %v2338 = vadd.f32 %v2314, %v2327
        %v2339 = vadd.f32 %v2315, %v2327
        %v2340 = vadd.f32 %v2316, %v2327
        %v2341 = vadd.f32 %v2317, %v2327
        %v2342 = vadd.f32 %v2318, %v2327
        %v2343 = vadd.f32 %v2319, %v2327
        %v2344 = vadd.f32 %v2320, %v2327
        %v2345 = vmul.f32 %v387, %v2329
        %v2346 = vmul.f32 %v388, %v2330
        %v2347 = vmul.f32 %v389, %v2331
        %v2348 = vmul.f32 %v390, %v2332
        %v2349 = vmul.f32 %v391, %v2333
        %v2350 = vmul.f32 %v392, %v2334
        %v2351 = vmul.f32 %v393, %v2335
        %v2352 = vmul.f32 %v394, %v2336
        %v2353 = vmul.f32 %v395, %v2337
        %v2354 = vmul.f32 %v396, %v2338
        %v2355 = vmul.f32 %v397, %v2339
        %v2356 = vmul.f32 %v398, %v2340
        %v2357 = vmul.f32 %v399, %v2341
        %v2358 = vmul.f32 %v400, %v2342
        %v2359 = vmul.f32 %v401, %v2343
        %v2360 = vmul.f32 %v402, %v2344
        %v2361 = vadd.f32 %v2345, %v1726
        %v2362 = vadd.f32 %v2346, %v1727
        %v2363 = vadd.f32 %v2347, %v1728
        %v2364 = vadd.f32 %v2348, %v1729
        %v2365 = vadd.f32 %v2349, %v1730
        %v2366 = vadd.f32 %v2350, %v1731
        %v2367 = vadd.f32 %v2351, %v1732
        %v2368 = vadd.f32 %v2352, %v1733
        %v2369 = vadd.f32 %v2353, %v1734
        %v2370 = vadd.f32 %v2354, %v1735
        %v2371 = vadd.f32 %v2355, %v1736
        %v2372 = vadd.f32 %v2356, %v1737
        %v2373 = vadd.f32 %v2357, %v1738
        %v2374 = vadd.f32 %v2358, %v1739
        %v2375 = vadd.f32 %v2359, %v1740
        %v2376 = vadd.f32 %v2360, %v1741
        %v2377 = vld [vmem:[%s10] sm:$0x3]
        %v2378 = vpack.c.bf16 %v2362, %v2361
        %v2379 = vpack.c.bf16 %v2364, %v2363
        %v2380 = vpack.c.bf16 %v2366, %v2365
        %v2381 = vpack.c.bf16 %v2368, %v2367
        %v2382 = vpack.c.bf16 %v2370, %v2369
        %v2383 = vpack.c.bf16 %v2372, %v2371
        %v2384 = vpack.c.bf16 %v2374, %v2373
        %v2385 = vpack.c.bf16 %v2376, %v2375
        %s2386 = sld [smem:[#allocation5]]
        %v2387 = vstv %s2386
        %2388 = vmatprep.subr.bf16.mxu0 0
        %2389 = vmatpush1.bf16.xpose.msra.mxu0 %v2378
        %2390 = vmatprep.subr.bf16.mxu0 0
        %2391 = vmatpush1.bf16.xpose.msra.mxu0 %v2379
        %2392 = vmatprep.subr.bf16.mxu0 0
        %2393 = vmatpush1.bf16.xpose.msra.mxu0 %v2380
        %2394 = vmatprep.subr.bf16.mxu0 0
        %2395 = vmatpush1.bf16.xpose.msra.mxu0 %v2381
        %2396 = vmatprep.subr.bf16.mxu0 0
        %2397 = vmatpush1.bf16.xpose.msra.mxu0 %v2382
        %2398 = vmatprep.subr.bf16.mxu0 0
        %2399 = vmatpush1.bf16.xpose.msra.mxu0 %v2383
        %2400 = vmatprep.subr.bf16.mxu0 0
        %2401 = vmatpush1.bf16.xpose.msra.mxu0 %v2384
        %2402 = vmatprep.subr.bf16.mxu0 0
        %2403 = vmatpush1.bf16.xpose.msra.mxu0 %v2385
        %2404 = vmatprep.subr.bf16.mxu0 0
        %2405 = vmatpush1.bf16.xpose.msra.mxu0 0
        %2406 = vmatprep.subr.bf16.mxu0 0
        %2407 = vmatpush1.bf16.xpose.msra.mxu0 0
        %2408 = vmatprep.subr.bf16.mxu0 0
        %2409 = vmatpush1.bf16.xpose.msra.mxu0 0
        %2410 = vmatprep.subr.bf16.mxu0 0
        %2411 = vmatpush1.bf16.xpose.msra.mxu0 0
        %2412 = vmatprep.subr.bf16.mxu0 0
        %2413 = vmatpush1.bf16.xpose.msra.mxu0 0
        %2414 = vmatprep.subr.bf16.mxu0 0
        %2415 = vmatpush1.bf16.xpose.msra.mxu0 0
        %2416 = vmatprep.subr.bf16.mxu0 0
        %2417 = vmatpush1.bf16.xpose.msra.mxu0 0
        %2418 = vmatprep.subr.bf16.mxu0 0
        %2419 = vmatpush1.bf16.xpose.msra.mxu0 0
        %2420 = vmatprep.mubr.bf16.mxu0 0
        %2421 = vmatmul.mubr.bf16.gmra.mrb[0].mxu0 %v2377
        %v2422 = vpop.f32.mrb[0].mxu0
        %v2423 = vadd.f32 %v2387, %v2422
        %v2424 = vpop.f32.mrb[0].mxu0
        %v2425 = vpop.f32.mrb[0].mxu0
        %v2426 = vpop.f32.mrb[0].mxu0
        %2427 = vdwg.mxu0
        %2428 = vst [vmem:[%s384] sm:$0xf] %v2423
        %s2429 = sand.u32 %s237, 1
        %s2430 = scalar_lea.sflag [#allocation8], %s2429
        %s2431 = sand.u32 %s237, 1
        %s2432 = smul.addr %s2431, 4
        %s2433 = scalar_lea.vmem [#allocation12], %s2432
        // Predicated region
        $region65: #{tpu_custom_call.1} parent=51 // pred_check
          %p2434 = pneg %p247
        $region66: #{tpu_custom_call.1} parent=51 // pred_check_branch
          %2436 = sbr.rel (%p2434) target = $region68
        $region67: #{tpu_custom_call.1} parent=51 // pred_region
          %s2438 = ssub.s32 64, 64
          %2439 = vsyncadd %s2430, %s2438
          %s2440 = smul.addr %s45, 4
          %s2441 = sadd.s32 %s44, %s2440
          %s2442 = smul.addr %s2441, 64
          %s2443 = scalar_lea.hbm %s11, %s2442
          %s2445 = sshll.u32 %s2433, 4
          %s2446 = int_to_ptr.vmem [resolvable:$true] %s2445
          %2448 = dma.vmem_to_hbm [thread:$0]  %s2446, 64, %s2443, %s2430
        $region68: #{tpu_custom_call.1} parent=51 // pred_fallthru
          _
      $region52: #{tpu_custom_call.1} parent=5 // pred_fallthru
        _
      %p2449 = scmp.le.s32.totalorder 2, %s35
      // Predicated region
      $region69: #{tpu_custom_call.1} parent=5 // pred_check
        %p2450 = pneg %p2449
      $region70: #{tpu_custom_call.1} parent=5 // pred_check_branch
        %2452 = sbr.rel (%p2450) target = $region72
      $region71: #{tpu_custom_call.1} parent=5 // pred_region
        %s2453 = ssub.s32 %s35, 2
        // Predicated region
        $region73: #{tpu_custom_call.1} parent=71 // pred_check
          %p2454 = pneg %p253
        $region74: #{tpu_custom_call.1} parent=71 // pred_check_branch
          %2456 = sbr.rel (%p2454) target = $region76
        $region75: #{tpu_custom_call.1} parent=71 // pred_region
          %s2457 = sand.u32 %s238, 1
          %s2458 = scalar_lea.sflag [#allocation8], %s2457
          %s2459 = sand.u32 %s238, 1
          %s2460 = smul.addr %s2459, 4
          %s2461 = scalar_lea.vmem [#allocation12], %s2460
          %2462 = dma.done %s2458, 64
        $region76: #{tpu_custom_call.1} parent=71 // pred_fallthru
          _
      $region72: #{tpu_custom_call.1} parent=5 // pred_fallthru
        _
    $region6: #{tpu_custom_call.1} parent=1 // loop_footer
      %s39 = sadd.s32 1, %s35
    $region7: #{tpu_custom_call.1} parent=1 // loop_footer_branch
      %34 = sbr.rel target = $region3
    $region8: #{tpu_custom_call.1} parent=1 // loop_exit
      _
    %2463 = vsyncpa [#allocation7], 1
    %s2464 = scalar_lea.sflag [#allocation7], 1
    %2465 = vsyncpa %s2464, 1
    %2466 = vsyncpa [#allocation10], 1
    %2467 = vsyncpa [#allocation8], 1
    %s2468 = scalar_lea.sflag [#allocation8], 1
    %2469 = vsyncpa %s2468, 1

</llo_original>
